<compile_context>
chip_gen: v7x
topology: tpu7x:2x2x1
jax: 0.10.0
libtpu: 0.0.40
codegen_flags: <defaults>
</compile_context>

<pallas_src>
import math
import functools

import numpy as np
import jax
import jax.numpy as jnp
from jax.experimental import pallas as pl
from jax.experimental.pallas import tpu as pltpu

# ----------------------------------------------------------------------------
# Model configuration (small, deterministic block_cfg analogue)
# ----------------------------------------------------------------------------
NC = 3                      # cfg.NUM_CLASSES
NA = 3                      # anchors per scale
NO = NC + 5                 # outputs per anchor

DET_IDX = 4                 # block_cfg[0][0]
SEG_OUT_IDX = 6             # block_cfg[0][1]

# (from_, type, args)   conv args: (c_in, c_out, k, s)
BLOCK_CFG = [
    (-1, "conv",   (3,  8, 3, 2)),   # 0: 16x16 -> 8x8
    (-1, "conv",   (8, 16, 3, 2)),   # 1: 8x8  -> 4x4
    (-1, "conv",   (16, 16, 3, 1)),  # 2  (cached: MCnet.save)
    (-1, "conv",   (16, 16, 1, 1)),  # 3
    (-1, "detect", (16,)),           # 4: Detect head (single scale)
    (2,  "conv",   (16, 8, 3, 1)),   # 5: seg branch reads cache[2]
    (-1, "conv",   (8,  1, 1, 1)),   # 6: seg head, nn.Sigmoid appended
]
STRIDE = 4.0                # two stride-2 convs -> detector stride
LANE = 128                  # TPU lane width


# ----------------------------------------------------------------------------
# Fused Pallas kernel: whole MCnet forward, weights VMEM-resident
# ----------------------------------------------------------------------------
def _mcnet_kernel(x_ref,
                  a0, t0, a1, t1, a2, t2, a3, t3,
                  adet, bdet, a5, t5, a6, t6,
                  det_ref, seg_ref):
    def dense(x, a_ref):                         # bf16 MXU matmul, f32 accumulate
        return jnp.dot(x.astype(jnp.bfloat16), a_ref[...],
                       preferred_element_type=jnp.float32)

    def conv_bn_silu(x, a_ref, sh_ref):          # Conv+BN folded into A -> shift + SiLU
        y = dense(x, a_ref) + sh_ref[...]
        return y / (1.0 + jnp.exp(-y))           # exact SiLU (f32)

    x = x_ref[...]                                    # (tm, H*W*3) bf16
    x0 = conv_bn_silu(x, a0, t0)                      # layer 0
    x1 = conv_bn_silu(x0, a1, t1)                     # layer 1
    x2 = conv_bn_silu(x1, a2, t2)                     # layer 2 (cache[2])
    x3 = conv_bn_silu(x2, a3, t3)                     # layer 3
    det_ref[...] = dense(x3, adet) + bdet[...]        # layer 4: Detect 1x1 conv + bias
    x5 = conv_bn_silu(x2, a5, t5)                     # layer 5 (reads cache[2])
    x6 = conv_bn_silu(x5, a6, t6)                     # layer 6: seg conv (Conv+BN+SiLU)
    seg_ref[...] = 1.0 / (1.0 + jnp.exp(-x6))         # appended nn.Sigmoid (exact f32)


# ----------------------------------------------------------------------------
# MCnet forward (mirrors MCnet.forward: cache / seg_out_idx / detector_index)
# ----------------------------------------------------------------------------
def mcnet_forward(params, x_nchw):
    N, C, H, W = x_nchw.shape
    # NCHW -> NHWC -> one row per image (pixel*channel flattened), cast to bf16 once.
    x = jnp.transpose(x_nchw.astype(jnp.float32), (0, 2, 3, 1)).reshape(N, H * W * C)
    x = x.astype(jnp.bfloat16)

    # Pad batch rows to a bf16 sublane-packing multiple (16); block the grid at 128 rows.
    tm = 128
    Mp = pl.cdiv(N, 16) * 16
    if Mp <= tm:
        tm = Mp
    else:
        Mp = pl.cdiv(Mp, tm) * tm
    if Mp != N:
        x = jnp.pad(x, ((0, Mp - N), (0, 0)))

    p0, p1, p2, p3, pdet, p5, p6 = params
    weight_args = (p0["A"], p0["shift"], p1["A"], p1["shift"],
                   p2["A"], p2["shift"], p3["A"], p3["shift"],
                   pdet["A"], pdet["bias"],
                   p5["A"], p5["shift"], p6["A"], p6["shift"])

    def resident(arr):   # full-extent block, constant index -> stays VMEM-resident
        return pl.BlockSpec(arr.shape, lambda i: (0, 0))

    det_cols = pdet["A"].shape[1]     # 384 = 3 * 128 (already lane-dense)
    seg_cols = p6["A"].shape[1]       # 128 (zero-padded lane-dense)

    det_flat, seg_flat = pl.pallas_call(
        _mcnet_kernel,
        grid=(Mp // tm,),
        in_specs=[pl.BlockSpec((tm, H * W * C), lambda i: (i, 0))]
                 + [resident(a) for a in weight_args],
        out_specs=(pl.BlockSpec((tm, det_cols), lambda i: (i, 0)),
                   pl.BlockSpec((tm, seg_cols), lambda i: (i, 0))),
        out_shape=(jax.ShapeDtypeStruct((Mp, det_cols), jnp.float32),
                   jax.ShapeDtypeStruct((Mp, seg_cols), jnp.float32)),
        compiler_params=pltpu.CompilerParams(
            dimension_semantics=("parallel",),
            vmem_limit_bytes=32 * 1024 * 1024),
    )(x, *weight_args)

    hd, wd = pdet["hw"]
    det = det_flat[:N].reshape(N, hd, wd, NA, NO).transpose(0, 3, 1, 2, 4)  # (B,na,H,W,no)
    hs, ws = p6["hw"]
    c_out = p6["c_out"]
    seg = seg_flat[:N, :hs * ws * c_out].reshape(N, hs, ws, c_out).transpose(0, 3, 1, 2)

    # MCnet.forward: out = [det_out (list of per-scale maps), sigmoid(seg)]
    return [[det], seg]


# ----------------------------------------------------------------------------
# Init-time folding: conv -> dense matrix on the flattened pixel*channel axis
# ----------------------------------------------------------------------------
def _fold_conv(w_kkcico, k, s, hi, wi):
    """Fold Conv2d(k, s, pad=k//2, bias=False) into a dense matrix acting on the
    NHWC-flattened (pixel*channel) axis, specialised to a hi x wi input."""
    ci, co = w_kkcico.shape[2], w_kkcico.shape[3]
    p = k // 2
    ho = (hi + 2 * p - k) // s + 1
    wo = (wi + 2 * p - k) // s + 1
    A = np.zeros((hi * wi * ci, ho * wo * co), np.float32)
    for oy in range(ho):
        for ox in range(wo):
            for dy in range(k):
                for dx in range(k):
                    iy, ix = oy * s + dy - p, ox * s + dx - p
                    if 0 <= iy < hi and 0 <= ix < wi:
                        r0 = (iy * wi + ix) * ci
                        c0 = (oy * wo + ox) * co
                        A[r0:r0 + ci, c0:c0 + co] = w_kkcico[dy, dx]
    return A, ho, wo


def init_params(key, input_hw=(16, 16)):
    eps = 1e-3                       # initialize_weights sets BatchNorm eps=1e-3
    params, dims = [], []
    cur_hw = input_hw
    for i, (from_, btype, args) in enumerate(BLOCK_CFG):
        in_hw = cur_hw if from_ == -1 else dims[from_]
        key, k1, k2, k3, k4, k5 = jax.random.split(key, 6)
        if btype == "conv":
            c_in, c_out, k, s = args
            w = np.asarray(jax.random.normal(k1, (k, k, c_in, c_out), jnp.float32) * 0.1)
            gamma = np.asarray(jax.random.uniform(k2, (c_out,), jnp.float32, 0.5, 1.5))
            beta = np.asarray(jax.random.normal(k3, (c_out,), jnp.float32) * 0.1)
            mean = np.asarray(jax.random.normal(k4, (c_out,), jnp.float32) * 0.1)
            var = np.asarray(jax.random.uniform(k5, (c_out,), jnp.float32, 0.5, 1.5))
            scale = gamma / np.sqrt(var + eps)          # folded BatchNorm
            shift = beta - mean * scale
            A, ho, wo = _fold_conv(w, k, s, *in_hw)
            scale_t = np.tile(scale, ho * wo)
            shift_t = np.tile(shift, ho * wo)
            A = A * scale_t[None, :]                    # fold BN scale into the matrix
            if i == SEG_OUT_IDX:                        # lane-dense seg head (16 -> 128 cols)
                pad = (-A.shape[1]) % LANE
                if pad:
                    A = np.pad(A, ((0, 0), (0, pad)))
                    shift_t = np.pad(shift_t, (0, pad))
            params.append({
                "A": jnp.asarray(A, jnp.bfloat16),       # bf16 MXU operand
                "shift": jnp.asarray(shift_t[None, :], jnp.float32),
                "hw": (ho, wo), "c_out": c_out,
            })
            out_hw = (ho, wo)
        else:  # detect: per-scale 1x1 conv with bias (block-diagonal fold)
            (c_in,) = args
            w = np.asarray(jax.random.normal(k1, (c_in, NA * NO), jnp.float32) * 0.1)
            bound = 1.0 / math.sqrt(c_in)
            b = jax.random.uniform(k2, (NA, NO), jnp.float32, -bound, bound)
            # MCnet._initialize_biases
            b = b.at[:, 4].add(math.log(8.0 / (640.0 / STRIDE) ** 2))
            b = b.at[:, 5:].add(math.log(0.6 / (NC - 0.99)))
            b = np.asarray(b).reshape(-1)
            hi, wi = in_hw
            npix = hi * wi
            A = np.zeros((npix * c_in, npix * NA * NO), np.float32)
            for pix in range(npix):
                A[pix * c_in:(pix + 1) * c_in,
                  pix * NA * NO:(pix + 1) * NA * NO] = w
            params.append({
                "A": jnp.asarray(A, jnp.bfloat16),
                "bias": jnp.asarray(np.tile(b, npix)[None, :], jnp.float32),
                "hw": in_hw,
            })
            out_hw = in_hw
        dims.append(out_hw)
        cur_hw = out_hw
    return params


# ----------------------------------------------------------------------------
if __name__ == "__main__":
    key = jax.random.PRNGKey(0)
    kp, kx = jax.random.split(key)
    params = init_params(kp, input_hw=(16, 16))

    x = jax.random.normal(kx, (2, 3, 16, 16), jnp.float32)   # NCHW like PyTorch

    fwd = jax.jit(functools.partial(mcnet_forward, params))
    det_out, seg_out = fwd(x)
    jax.block_until_ready((det_out, seg_out))

    assert det_out[0].shape == (2, NA, 4, 4, NO), det_out[0].shape
    assert seg_out.shape == (2, 1, 4, 4), seg_out.shape
    assert bool(jnp.all(jnp.isfinite(det_out[0])))
    assert bool(jnp.all((seg_out >= 0.0) & (seg_out <= 1.0)))

    print("KERNEL_OK")
</pallas_src>

<mosaic_0001>
module attributes {stable_mosaic.version = 11 : i64} {
  func.func @_mcnet_kernel(%arg0: i32, %arg1: memref<16x768xbf16, #tpu.memory_space<vmem>>, %arg2: memref<768x512xbf16, #tpu.memory_space<vmem>>, %arg3: memref<1x512xf32, #tpu.memory_space<vmem>>, %arg4: memref<512x256xbf16, #tpu.memory_space<vmem>>, %arg5: memref<1x256xf32, #tpu.memory_space<vmem>>, %arg6: memref<256x256xbf16, #tpu.memory_space<vmem>>, %arg7: memref<1x256xf32, #tpu.memory_space<vmem>>, %arg8: memref<256x256xbf16, #tpu.memory_space<vmem>>, %arg9: memref<1x256xf32, #tpu.memory_space<vmem>>, %arg10: memref<256x384xbf16, #tpu.memory_space<vmem>>, %arg11: memref<1x384xf32, #tpu.memory_space<vmem>>, %arg12: memref<256x128xbf16, #tpu.memory_space<vmem>>, %arg13: memref<1x128xf32, #tpu.memory_space<vmem>>, %arg14: memref<128x128xbf16, #tpu.memory_space<vmem>>, %arg15: memref<1x128xf32, #tpu.memory_space<vmem>>, %arg16: memref<16x384xf32, #tpu.memory_space<vmem>>, %arg17: memref<16x128xf32, #tpu.memory_space<vmem>>) attributes {dimension_semantics = [#tpu.dimension_semantics<parallel>], iteration_bounds = array<i64: 1>, scalar_prefetch = 0 : i64, scratch_operands = 0 : i64, tpu.core_type = #tpu.core_type<tc>, window_params = [{transform_indices = @transform_0, window_bounds = array<i64: 16, 768>}, {pipeline_mode = #tpu.pipeline_mode<synchronous>, transform_indices = @transform_1, window_bounds = array<i64: 768, 512>}, {pipeline_mode = #tpu.pipeline_mode<synchronous>, transform_indices = @transform_2, window_bounds = array<i64: 1, 512>}, {pipeline_mode = #tpu.pipeline_mode<synchronous>, transform_indices = @transform_3, window_bounds = array<i64: 512, 256>}, {pipeline_mode = #tpu.pipeline_mode<synchronous>, transform_indices = @transform_4, window_bounds = array<i64: 1, 256>}, {pipeline_mode = #tpu.pipeline_mode<synchronous>, transform_indices = @transform_5, window_bounds = array<i64: 256, 256>}, {pipeline_mode = #tpu.pipeline_mode<synchronous>, transform_indices = @transform_6, window_bounds = array<i64: 1, 256>}, {pipeline_mode = #tpu.pipeline_mode<synchronous>, transform_indices = @transform_7, window_bounds = array<i64: 256, 256>}, {pipeline_mode = #tpu.pipeline_mode<synchronous>, transform_indices = @transform_8, window_bounds = array<i64: 1, 256>}, {pipeline_mode = #tpu.pipeline_mode<synchronous>, transform_indices = @transform_9, window_bounds = array<i64: 256, 384>}, {pipeline_mode = #tpu.pipeline_mode<synchronous>, transform_indices = @transform_10, window_bounds = array<i64: 1, 384>}, {pipeline_mode = #tpu.pipeline_mode<synchronous>, transform_indices = @transform_11, window_bounds = array<i64: 256, 128>}, {pipeline_mode = #tpu.pipeline_mode<synchronous>, transform_indices = @transform_12, window_bounds = array<i64: 1, 128>}, {pipeline_mode = #tpu.pipeline_mode<synchronous>, transform_indices = @transform_13, window_bounds = array<i64: 128, 128>}, {pipeline_mode = #tpu.pipeline_mode<synchronous>, transform_indices = @transform_14, window_bounds = array<i64: 1, 128>}, {transform_indices = @transform_15, window_bounds = array<i64: 16, 384>}, {transform_indices = @transform_16, window_bounds = array<i64: 16, 128>}]} {
    %c0 = arith.constant 0 : index
    %c0_0 = arith.constant 0 : index
    %0 = vector.load %arg1[%c0, %c0_0] : memref<16x768xbf16, #tpu.memory_space<vmem>>, vector<16x768xbf16>
    %c0_1 = arith.constant 0 : index
    %c0_2 = arith.constant 0 : index
    %1 = vector.load %arg2[%c0_1, %c0_2] : memref<768x512xbf16, #tpu.memory_space<vmem>>, vector<768x512xbf16>
    %cst = arith.constant dense<0.000000e+00> : vector<16x512xf32>
    %2 = tpu.matmul %0, %1, %cst {dimension_numbers = #tpu.dot_dimension_numbers<[1], [0], [0], [1], [0, 0, 1, 1], [], []>} : vector<16x768xbf16>, vector<768x512xbf16>, vector<16x512xf32> -> vector<16x512xf32>
    %c0_3 = arith.constant 0 : index
    %c0_4 = arith.constant 0 : index
    %3 = vector.load %arg3[%c0_3, %c0_4] : memref<1x512xf32, #tpu.memory_space<vmem>>, vector<1x512xf32>
    %4 = vector.broadcast %3 : vector<1x512xf32> to vector<16x512xf32>
    %5 = arith.addf %2, %4 : vector<16x512xf32>
    %cst_5 = arith.constant 0.000000e+00 : f32
    %6 = vector.broadcast %cst_5 : f32 to vector<16x512xf32>
    %7 = arith.subf %6, %5 : vector<16x512xf32>
    %8 = math.exp %7 : vector<16x512xf32>
    %cst_6 = arith.constant 1.000000e+00 : f32
    %9 = vector.broadcast %cst_6 : f32 to vector<16x512xf32>
    %10 = arith.addf %9, %8 : vector<16x512xf32>
    %11 = arith.divf %5, %10 : vector<16x512xf32>
    %12 = arith.truncf %11 : vector<16x512xf32> to vector<16x512xbf16>
    %c0_7 = arith.constant 0 : index
    %c0_8 = arith.constant 0 : index
    %13 = vector.load %arg4[%c0_7, %c0_8] : memref<512x256xbf16, #tpu.memory_space<vmem>>, vector<512x256xbf16>
    %cst_9 = arith.constant dense<0.000000e+00> : vector<16x256xf32>
    %14 = tpu.matmul %12, %13, %cst_9 {dimension_numbers = #tpu.dot_dimension_numbers<[1], [0], [0], [1], [0, 0, 1, 1], [], []>} : vector<16x512xbf16>, vector<512x256xbf16>, vector<16x256xf32> -> vector<16x256xf32>
    %c0_10 = arith.constant 0 : index
    %c0_11 = arith.constant 0 : index
    %15 = vector.load %arg5[%c0_10, %c0_11] : memref<1x256xf32, #tpu.memory_space<vmem>>, vector<1x256xf32>
    %16 = vector.broadcast %15 : vector<1x256xf32> to vector<16x256xf32>
    %17 = arith.addf %14, %16 : vector<16x256xf32>
    %cst_12 = arith.constant 0.000000e+00 : f32
    %18 = vector.broadcast %cst_12 : f32 to vector<16x256xf32>
    %19 = arith.subf %18, %17 : vector<16x256xf32>
    %20 = math.exp %19 : vector<16x256xf32>
    %cst_13 = arith.constant 1.000000e+00 : f32
    %21 = vector.broadcast %cst_13 : f32 to vector<16x256xf32>
    %22 = arith.addf %21, %20 : vector<16x256xf32>
    %23 = arith.divf %17, %22 : vector<16x256xf32>
    %24 = arith.truncf %23 : vector<16x256xf32> to vector<16x256xbf16>
    %c0_14 = arith.constant 0 : index
    %c0_15 = arith.constant 0 : index
    %25 = vector.load %arg6[%c0_14, %c0_15] : memref<256x256xbf16, #tpu.memory_space<vmem>>, vector<256x256xbf16>
    %cst_16 = arith.constant dense<0.000000e+00> : vector<16x256xf32>
    %26 = tpu.matmul %24, %25, %cst_16 {dimension_numbers = #tpu.dot_dimension_numbers<[1], [0], [0], [1], [0, 0, 1, 1], [], []>} : vector<16x256xbf16>, vector<256x256xbf16>, vector<16x256xf32> -> vector<16x256xf32>
    %c0_17 = arith.constant 0 : index
    %c0_18 = arith.constant 0 : index
    %27 = vector.load %arg7[%c0_17, %c0_18] : memref<1x256xf32, #tpu.memory_space<vmem>>, vector<1x256xf32>
    %28 = vector.broadcast %27 : vector<1x256xf32> to vector<16x256xf32>
    %29 = arith.addf %26, %28 : vector<16x256xf32>
    %cst_19 = arith.constant 0.000000e+00 : f32
    %30 = vector.broadcast %cst_19 : f32 to vector<16x256xf32>
    %31 = arith.subf %30, %29 : vector<16x256xf32>
    %32 = math.exp %31 : vector<16x256xf32>
    %cst_20 = arith.constant 1.000000e+00 : f32
    %33 = vector.broadcast %cst_20 : f32 to vector<16x256xf32>
    %34 = arith.addf %33, %32 : vector<16x256xf32>
    %35 = arith.divf %29, %34 : vector<16x256xf32>
    %36 = arith.truncf %35 : vector<16x256xf32> to vector<16x256xbf16>
    %c0_21 = arith.constant 0 : index
    %c0_22 = arith.constant 0 : index
    %37 = vector.load %arg8[%c0_21, %c0_22] : memref<256x256xbf16, #tpu.memory_space<vmem>>, vector<256x256xbf16>
    %cst_23 = arith.constant dense<0.000000e+00> : vector<16x256xf32>
    %38 = tpu.matmul %36, %37, %cst_23 {dimension_numbers = #tpu.dot_dimension_numbers<[1], [0], [0], [1], [0, 0, 1, 1], [], []>} : vector<16x256xbf16>, vector<256x256xbf16>, vector<16x256xf32> -> vector<16x256xf32>
    %c0_24 = arith.constant 0 : index
    %c0_25 = arith.constant 0 : index
    %39 = vector.load %arg9[%c0_24, %c0_25] : memref<1x256xf32, #tpu.memory_space<vmem>>, vector<1x256xf32>
    %40 = vector.broadcast %39 : vector<1x256xf32> to vector<16x256xf32>
    %41 = arith.addf %38, %40 : vector<16x256xf32>
    %cst_26 = arith.constant 0.000000e+00 : f32
    %42 = vector.broadcast %cst_26 : f32 to vector<16x256xf32>
    %43 = arith.subf %42, %41 : vector<16x256xf32>
    %44 = math.exp %43 : vector<16x256xf32>
    %cst_27 = arith.constant 1.000000e+00 : f32
    %45 = vector.broadcast %cst_27 : f32 to vector<16x256xf32>
    %46 = arith.addf %45, %44 : vector<16x256xf32>
    %47 = arith.divf %41, %46 : vector<16x256xf32>
    %48 = arith.truncf %47 : vector<16x256xf32> to vector<16x256xbf16>
    %c0_28 = arith.constant 0 : index
    %c0_29 = arith.constant 0 : index
    %49 = vector.load %arg10[%c0_28, %c0_29] : memref<256x384xbf16, #tpu.memory_space<vmem>>, vector<256x384xbf16>
    %cst_30 = arith.constant dense<0.000000e+00> : vector<16x384xf32>
    %50 = tpu.matmul %48, %49, %cst_30 {dimension_numbers = #tpu.dot_dimension_numbers<[1], [0], [0], [1], [0, 0, 1, 1], [], []>} : vector<16x256xbf16>, vector<256x384xbf16>, vector<16x384xf32> -> vector<16x384xf32>
    %c0_31 = arith.constant 0 : index
    %c0_32 = arith.constant 0 : index
    %51 = vector.load %arg11[%c0_31, %c0_32] : memref<1x384xf32, #tpu.memory_space<vmem>>, vector<1x384xf32>
    %52 = vector.broadcast %51 : vector<1x384xf32> to vector<16x384xf32>
    %53 = arith.addf %50, %52 : vector<16x384xf32>
    %c0_33 = arith.constant 0 : index
    %c0_34 = arith.constant 0 : index
    %54 = vector.load %arg16[%c0_33, %c0_34] : memref<16x384xf32, #tpu.memory_space<vmem>>, vector<16x384xf32>
    tpu.vector_store %arg16[%c0_33, %c0_34], %53 {strides = array<i32>} : memref<16x384xf32, #tpu.memory_space<vmem>>, vector<16x384xf32>,
    %55 = arith.truncf %35 : vector<16x256xf32> to vector<16x256xbf16>
    %c0_35 = arith.constant 0 : index
    %c0_36 = arith.constant 0 : index
    %56 = vector.load %arg12[%c0_35, %c0_36] : memref<256x128xbf16, #tpu.memory_space<vmem>>, vector<256x128xbf16>
    %cst_37 = arith.constant dense<0.000000e+00> : vector<16x128xf32>
    %57 = tpu.matmul %55, %56, %cst_37 {dimension_numbers = #tpu.dot_dimension_numbers<[1], [0], [0], [1], [0, 0, 1, 1], [], []>} : vector<16x256xbf16>, vector<256x128xbf16>, vector<16x128xf32> -> vector<16x128xf32>
    %c0_38 = arith.constant 0 : index
    %c0_39 = arith.constant 0 : index
    %58 = vector.load %arg13[%c0_38, %c0_39] : memref<1x128xf32, #tpu.memory_space<vmem>>, vector<1x128xf32>
    %59 = vector.broadcast %58 : vector<1x128xf32> to vector<16x128xf32>
    %60 = arith.addf %57, %59 : vector<16x128xf32>
    %cst_40 = arith.constant 0.000000e+00 : f32
    %61 = vector.broadcast %cst_40 : f32 to vector<16x128xf32>
    %62 = arith.subf %61, %60 : vector<16x128xf32>
    %63 = math.exp %62 : vector<16x128xf32>
    %cst_41 = arith.constant 1.000000e+00 : f32
    %64 = vector.broadcast %cst_41 : f32 to vector<16x128xf32>
    %65 = arith.addf %64, %63 : vector<16x128xf32>
    %66 = arith.divf %60, %65 : vector<16x128xf32>
    %67 = arith.truncf %66 : vector<16x128xf32> to vector<16x128xbf16>
    %c0_42 = arith.constant 0 : index
    %c0_43 = arith.constant 0 : index
    %68 = vector.load %arg14[%c0_42, %c0_43] : memref<128x128xbf16, #tpu.memory_space<vmem>>, vector<128x128xbf16>
    %cst_44 = arith.constant dense<0.000000e+00> : vector<16x128xf32>
    %69 = tpu.matmul %67, %68, %cst_44 {dimension_numbers = #tpu.dot_dimension_numbers<[1], [0], [0], [1], [0, 0, 1, 1], [], []>} : vector<16x128xbf16>, vector<128x128xbf16>, vector<16x128xf32> -> vector<16x128xf32>
    %c0_45 = arith.constant 0 : index
    %c0_46 = arith.constant 0 : index
    %70 = vector.load %arg15[%c0_45, %c0_46] : memref<1x128xf32, #tpu.memory_space<vmem>>, vector<1x128xf32>
    %71 = vector.broadcast %70 : vector<1x128xf32> to vector<16x128xf32>
    %72 = arith.addf %69, %71 : vector<16x128xf32>
    %cst_47 = arith.constant 0.000000e+00 : f32
    %73 = vector.broadcast %cst_47 : f32 to vector<16x128xf32>
    %74 = arith.subf %73, %72 : vector<16x128xf32>
    %75 = math.exp %74 : vector<16x128xf32>
    %cst_48 = arith.constant 1.000000e+00 : f32
    %76 = vector.broadcast %cst_48 : f32 to vector<16x128xf32>
    %77 = arith.addf %76, %75 : vector<16x128xf32>
    %78 = arith.divf %72, %77 : vector<16x128xf32>
    %cst_49 = arith.constant 0.000000e+00 : f32
    %79 = vector.broadcast %cst_49 : f32 to vector<16x128xf32>
    %80 = arith.subf %79, %78 : vector<16x128xf32>
    %81 = math.exp %80 : vector<16x128xf32>
    %cst_50 = arith.constant 1.000000e+00 : f32
    %82 = vector.broadcast %cst_50 : f32 to vector<16x128xf32>
    %83 = arith.addf %82, %81 : vector<16x128xf32>
    %cst_51 = arith.constant 1.000000e+00 : f32
    %84 = vector.broadcast %cst_51 : f32 to vector<16x128xf32>
    %85 = arith.divf %84, %83 : vector<16x128xf32>
    %c0_52 = arith.constant 0 : index
    %c0_53 = arith.constant 0 : index
    %86 = vector.load %arg17[%c0_52, %c0_53] : memref<16x128xf32, #tpu.memory_space<vmem>>, vector<16x128xf32>
    tpu.vector_store %arg17[%c0_52, %c0_53], %85 {strides = array<i32>} : memref<16x128xf32, #tpu.memory_space<vmem>>, vector<16x128xf32>,
    return
  }
  func.func @transform_0(%arg0: i32) -> (i32, i32) {
    %c0_i32 = arith.constant 0 : i32
    %c0_i32_0 = arith.constant 0 : i32
    return %arg0, %c0_i32 : i32, i32
  }
  func.func @transform_1(%arg0: i32) -> (i32, i32) {
    %c0_i32 = arith.constant 0 : i32
    %c0_i32_0 = arith.constant 0 : i32
    %c0_i32_1 = arith.constant 0 : i32
    return %c0_i32, %c0_i32_0 : i32, i32
  }
  func.func @transform_2(%arg0: i32) -> (i32, i32) {
    %c0_i32 = arith.constant 0 : i32
    %c0_i32_0 = arith.constant 0 : i32
    %c0_i32_1 = arith.constant 0 : i32
    return %c0_i32, %c0_i32_0 : i32, i32
  }
  func.func @transform_3(%arg0: i32) -> (i32, i32) {
    %c0_i32 = arith.constant 0 : i32
    %c0_i32_0 = arith.constant 0 : i32
    %c0_i32_1 = arith.constant 0 : i32
    return %c0_i32, %c0_i32_0 : i32, i32
  }
  func.func @transform_4(%arg0: i32) -> (i32, i32) {
    %c0_i32 = arith.constant 0 : i32
    %c0_i32_0 = arith.constant 0 : i32
    %c0_i32_1 = arith.constant 0 : i32
    return %c0_i32, %c0_i32_0 : i32, i32
  }
  func.func @transform_5(%arg0: i32) -> (i32, i32) {
    %c0_i32 = arith.constant 0 : i32
    %c0_i32_0 = arith.constant 0 : i32
    %c0_i32_1 = arith.constant 0 : i32
    return %c0_i32, %c0_i32_0 : i32, i32
  }
  func.func @transform_6(%arg0: i32) -> (i32, i32) {
    %c0_i32 = arith.constant 0 : i32
    %c0_i32_0 = arith.constant 0 : i32
    %c0_i32_1 = arith.constant 0 : i32
    return %c0_i32, %c0_i32_0 : i32, i32
  }
  func.func @transform_7(%arg0: i32) -> (i32, i32) {
    %c0_i32 = arith.constant 0 : i32
    %c0_i32_0 = arith.constant 0 : i32
    %c0_i32_1 = arith.constant 0 : i32
    return %c0_i32, %c0_i32_0 : i32, i32
  }
  func.func @transform_8(%arg0: i32) -> (i32, i32) {
    %c0_i32 = arith.constant 0 : i32
    %c0_i32_0 = arith.constant 0 : i32
    %c0_i32_1 = arith.constant 0 : i32
    return %c0_i32, %c0_i32_0 : i32, i32
  }
  func.func @transform_9(%arg0: i32) -> (i32, i32) {
    %c0_i32 = arith.constant 0 : i32
    %c0_i32_0 = arith.constant 0 : i32
    %c0_i32_1 = arith.constant 0 : i32
    return %c0_i32, %c0_i32_0 : i32, i32
  }
  func.func @transform_10(%arg0: i32) -> (i32, i32) {
    %c0_i32 = arith.constant 0 : i32
    %c0_i32_0 = arith.constant 0 : i32
    %c0_i32_1 = arith.constant 0 : i32
    return %c0_i32, %c0_i32_0 : i32, i32
  }
  func.func @transform_11(%arg0: i32) -> (i32, i32) {
    %c0_i32 = arith.constant 0 : i32
    %c0_i32_0 = arith.constant 0 : i32
    %c0_i32_1 = arith.constant 0 : i32
    return %c0_i32, %c0_i32_0 : i32, i32
  }
  func.func @transform_12(%arg0: i32) -> (i32, i32) {
    %c0_i32 = arith.constant 0 : i32
    %c0_i32_0 = arith.constant 0 : i32
    %c0_i32_1 = arith.constant 0 : i32
    return %c0_i32, %c0_i32_0 : i32, i32
  }
  func.func @transform_13(%arg0: i32) -> (i32, i32) {
    %c0_i32 = arith.constant 0 : i32
    %c0_i32_0 = arith.constant 0 : i32
    %c0_i32_1 = arith.constant 0 : i32
    return %c0_i32, %c0_i32_0 : i32, i32
  }
  func.func @transform_14(%arg0: i32) -> (i32, i32) {
    %c0_i32 = arith.constant 0 : i32
    %c0_i32_0 = arith.constant 0 : i32
    %c0_i32_1 = arith.constant 0 : i32
    return %c0_i32, %c0_i32_0 : i32, i32
  }
  func.func @transform_15(%arg0: i32) -> (i32, i32) {
    %c0_i32 = arith.constant 0 : i32
    %c0_i32_0 = arith.constant 0 : i32
    return %arg0, %c0_i32 : i32, i32
  }
  func.func @transform_16(%arg0: i32) -> (i32, i32) {
    %c0_i32 = arith.constant 0 : i32
    %c0_i32_0 = arith.constant 0 : i32
    return %arg0, %c0_i32 : i32, i32
  }
}

</mosaic_0001>

<llo_original>
// kernel: mcnet_forward.1
$region0: #{mcnet_forward.1}
  #allocation0 [shape = 'u32[]', space=smem, size = 0x4, offset = 0x4, fixed_abs, tag = 'smem constant byte address 0x4 - core index']
  #allocation1 [shape = 'u32[144,128]{1,0:T(1,128)}', space=vmem, size = 0x12000, scoped, tag = 'internal scratch']
  %s0 = inlined_call_operand.vmem [shape: bf16[16,768], index: 0, kind: input, shape index: {}]
  %s1 = inlined_call_operand.vmem [shape: bf16[768,512], index: 1, kind: input, shape index: {}]
  %s2 = inlined_call_operand.vmem [shape: f32[1,512], index: 2, kind: input, shape index: {}]
  %s3 = inlined_call_operand.vmem [shape: bf16[512,256], index: 3, kind: input, shape index: {}]
  %s4 = inlined_call_operand.vmem [shape: f32[1,256], index: 4, kind: input, shape index: {}]
  %s5 = inlined_call_operand.vmem [shape: bf16[256,256], index: 5, kind: input, shape index: {}]
  %s6 = inlined_call_operand.vmem [shape: f32[1,256], index: 6, kind: input, shape index: {}]
  %s7 = inlined_call_operand.vmem [shape: bf16[256,256], index: 7, kind: input, shape index: {}]
  %s8 = inlined_call_operand.vmem [shape: f32[1,256], index: 8, kind: input, shape index: {}]
  %s9 = inlined_call_operand.vmem [shape: bf16[256,384], index: 9, kind: input, shape index: {}]
  %s10 = inlined_call_operand.vmem [shape: f32[1,384], index: 10, kind: input, shape index: {}]
  %s11 = inlined_call_operand.vmem [shape: bf16[256,128], index: 11, kind: input, shape index: {}]
  %s12 = inlined_call_operand.vmem [shape: f32[1,128], index: 12, kind: input, shape index: {}]
  %s13 = inlined_call_operand.vmem [shape: bf16[128,128], index: 13, kind: input, shape index: {}]
  %s14 = inlined_call_operand.vmem [shape: f32[1,128], index: 14, kind: input, shape index: {}]
  %s15 = inlined_call_operand.vmem [shape: f32[16,384], index: 15, kind: output, shape index: {0}]
  %s16 = inlined_call_operand.vmem [shape: f32[16,128], index: 16, kind: output, shape index: {1}]
  %17 = xla_tuple %s15, %s16
  %s18 = sld [smem:[#allocation0]]
  $region78: #{mcnet_forward.1} parent=0
    _
  %s20 = ssub.s32 1, %s18
  %s21 = scalar_select 0, %s20, %s18
  // Predicated region
  $region2: #{mcnet_forward.1} parent=0 // pred_check
    _
  $region3: #{mcnet_forward.1} parent=0 // pred_check_branch
    %23 = sbr.rel (0) target = $region5
  $region4: #{mcnet_forward.1} parent=0 // pred_region
    _
  $region5: #{mcnet_forward.1} parent=0 // pred_fallthru
    _
  // Predicated region
  $region6: #{mcnet_forward.1} parent=0 // pred_check
    _
  $region7: #{mcnet_forward.1} parent=0 // pred_check_branch
    %25 = sbr.rel (0) target = $region9
  $region8: #{mcnet_forward.1} parent=0 // pred_region
    _
  $region9: #{mcnet_forward.1} parent=0 // pred_fallthru
    _
  // Predicated region
  $region10: #{mcnet_forward.1} parent=0 // pred_check
    _
  $region11: #{mcnet_forward.1} parent=0 // pred_check_branch
    %27 = sbr.rel (0) target = $region13
  $region12: #{mcnet_forward.1} parent=0 // pred_region
    _
  $region13: #{mcnet_forward.1} parent=0 // pred_fallthru
    _
  // Predicated region
  $region14: #{mcnet_forward.1} parent=0 // pred_check
    _
  $region15: #{mcnet_forward.1} parent=0 // pred_check_branch
    %29 = sbr.rel (0) target = $region17
  $region16: #{mcnet_forward.1} parent=0 // pred_region
    _
  $region17: #{mcnet_forward.1} parent=0 // pred_fallthru
    _
  // Predicated region
  $region18: #{mcnet_forward.1} parent=0 // pred_check
    _
  $region19: #{mcnet_forward.1} parent=0 // pred_check_branch
    %31 = sbr.rel (0) target = $region21
  $region20: #{mcnet_forward.1} parent=0 // pred_region
    _
  $region21: #{mcnet_forward.1} parent=0 // pred_fallthru
    _
  // Predicated region
  $region22: #{mcnet_forward.1} parent=0 // pred_check
    _
  $region23: #{mcnet_forward.1} parent=0 // pred_check_branch
    %33 = sbr.rel (0) target = $region25
  $region24: #{mcnet_forward.1} parent=0 // pred_region
    _
  $region25: #{mcnet_forward.1} parent=0 // pred_fallthru
    _
  // Predicated region
  $region26: #{mcnet_forward.1} parent=0 // pred_check
    _
  $region27: #{mcnet_forward.1} parent=0 // pred_check_branch
    %35 = sbr.rel (0) target = $region29
  $region28: #{mcnet_forward.1} parent=0 // pred_region
    _
  $region29: #{mcnet_forward.1} parent=0 // pred_fallthru
    _
  // Predicated region
  $region30: #{mcnet_forward.1} parent=0 // pred_check
    _
  $region31: #{mcnet_forward.1} parent=0 // pred_check_branch
    %37 = sbr.rel (0) target = $region33
  $region32: #{mcnet_forward.1} parent=0 // pred_region
    _
  $region33: #{mcnet_forward.1} parent=0 // pred_fallthru
    _
  // Predicated region
  $region34: #{mcnet_forward.1} parent=0 // pred_check
    _
  $region35: #{mcnet_forward.1} parent=0 // pred_check_branch
    %39 = sbr.rel (0) target = $region37
  $region36: #{mcnet_forward.1} parent=0 // pred_region
    _
  $region37: #{mcnet_forward.1} parent=0 // pred_fallthru
    _
  // Predicated region
  $region38: #{mcnet_forward.1} parent=0 // pred_check
    _
  $region39: #{mcnet_forward.1} parent=0 // pred_check_branch
    %41 = sbr.rel (0) target = $region41
  $region40: #{mcnet_forward.1} parent=0 // pred_region
    _
  $region41: #{mcnet_forward.1} parent=0 // pred_fallthru
    _
  // Predicated region
  $region42: #{mcnet_forward.1} parent=0 // pred_check
    _
  $region43: #{mcnet_forward.1} parent=0 // pred_check_branch
    %43 = sbr.rel (0) target = $region45
  $region44: #{mcnet_forward.1} parent=0 // pred_region
    _
  $region45: #{mcnet_forward.1} parent=0 // pred_fallthru
    _
  // Predicated region
  $region46: #{mcnet_forward.1} parent=0 // pred_check
    _
  $region47: #{mcnet_forward.1} parent=0 // pred_check_branch
    %45 = sbr.rel (0) target = $region49
  $region48: #{mcnet_forward.1} parent=0 // pred_region
    _
  $region49: #{mcnet_forward.1} parent=0 // pred_fallthru
    _
  // Predicated region
  $region50: #{mcnet_forward.1} parent=0 // pred_check
    _
  $region51: #{mcnet_forward.1} parent=0 // pred_check_branch
    %47 = sbr.rel (0) target = $region53
  $region52: #{mcnet_forward.1} parent=0 // pred_region
    _
  $region53: #{mcnet_forward.1} parent=0 // pred_fallthru
    _
  // Predicated region
  $region54: #{mcnet_forward.1} parent=0 // pred_check
    _
  $region55: #{mcnet_forward.1} parent=0 // pred_check_branch
    %49 = sbr.rel (0) target = $region57
  $region56: #{mcnet_forward.1} parent=0 // pred_region
    _
  $region57: #{mcnet_forward.1} parent=0 // pred_fallthru
    _
  // Predicated region
  $region58: #{mcnet_forward.1} parent=0 // pred_check
    _
  $region59: #{mcnet_forward.1} parent=0 // pred_check_branch
    %51 = sbr.rel (0) target = $region61
  $region60: #{mcnet_forward.1} parent=0 // pred_region
    _
  $region61: #{mcnet_forward.1} parent=0 // pred_fallthru
    _
  %v53 = vld [vmem:[%s0] sm:$0xff]
  %v54 = vld [vmem:[%s0 + $0x8] sm:$0xff]
  %v55 = vld [vmem:[%s0 + $0x10] sm:$0xff]
  %v56 = vld [vmem:[%s0 + $0x18] sm:$0xff]
  %v57 = vld [vmem:[%s0 + $0x20] sm:$0xff]
  %v58 = vld [vmem:[%s0 + $0x28] sm:$0xff]
  %v59 = vld [vmem:[%s1] sm:$0xff]
  %v60 = vld [vmem:[%s1 + $0x8] sm:$0xff]
  %v61 = vld [vmem:[%s1 + $0x10] sm:$0xff]
  %v62 = vld [vmem:[%s1 + $0x18] sm:$0xff]
  %v63 = vld [vmem:[%s1 + $0x20] sm:$0xff]
  %v64 = vld [vmem:[%s1 + $0x28] sm:$0xff]
  %v65 = vld [vmem:[%s1 + $0x30] sm:$0xff]
  %v66 = vld [vmem:[%s1 + $0x38] sm:$0xff]
  %v67 = vld [vmem:[%s1 + $0x40] sm:$0xff]
  %v68 = vld [vmem:[%s1 + $0x48] sm:$0xff]
  %v69 = vld [vmem:[%s1 + $0x50] sm:$0xff]
  %v70 = vld [vmem:[%s1 + $0x58] sm:$0xff]
  %v71 = vld [vmem:[%s1 + $0x60] sm:$0xff]
  %v72 = vld [vmem:[%s1 + $0x68] sm:$0xff]
  %v73 = vld [vmem:[%s1 + $0x70] sm:$0xff]
  %v74 = vld [vmem:[%s1 + $0x78] sm:$0xff]
  %v75 = vld [vmem:[%s1 + $0x80] sm:$0xff]
  %v76 = vld [vmem:[%s1 + $0x88] sm:$0xff]
  %v77 = vld [vmem:[%s1 + $0x90] sm:$0xff]
  %v78 = vld [vmem:[%s1 + $0x98] sm:$0xff]
  %v79 = vld [vmem:[%s1 + $0xa0] sm:$0xff]
  %v80 = vld [vmem:[%s1 + $0xa8] sm:$0xff]
  %v81 = vld [vmem:[%s1 + $0xb0] sm:$0xff]
  %v82 = vld [vmem:[%s1 + $0xb8] sm:$0xff]
  %v83 = vld [vmem:[%s1 + $0xc0] sm:$0xff]
  %v84 = vld [vmem:[%s1 + $0xc8] sm:$0xff]
  %v85 = vld [vmem:[%s1 + $0xd0] sm:$0xff]
  %v86 = vld [vmem:[%s1 + $0xd8] sm:$0xff]
  %v87 = vld [vmem:[%s1 + $0xe0] sm:$0xff]
  %v88 = vld [vmem:[%s1 + $0xe8] sm:$0xff]
  %v89 = vld [vmem:[%s1 + $0xf0] sm:$0xff]
  %v90 = vld [vmem:[%s1 + $0xf8] sm:$0xff]
  %v91 = vld [vmem:[%s1 + $0x100] sm:$0xff]
  %v92 = vld [vmem:[%s1 + $0x108] sm:$0xff]
  %v93 = vld [vmem:[%s1 + $0x110] sm:$0xff]
  %v94 = vld [vmem:[%s1 + $0x118] sm:$0xff]
  %v95 = vld [vmem:[%s1 + $0x120] sm:$0xff]
  %v96 = vld [vmem:[%s1 + $0x128] sm:$0xff]
  %v97 = vld [vmem:[%s1 + $0x130] sm:$0xff]
  %v98 = vld [vmem:[%s1 + $0x138] sm:$0xff]
  %v99 = vld [vmem:[%s1 + $0x140] sm:$0xff]
  %v100 = vld [vmem:[%s1 + $0x148] sm:$0xff]
  %v101 = vld [vmem:[%s1 + $0x150] sm:$0xff]
  %v102 = vld [vmem:[%s1 + $0x158] sm:$0xff]
  %v103 = vld [vmem:[%s1 + $0x160] sm:$0xff]
  %v104 = vld [vmem:[%s1 + $0x168] sm:$0xff]
  %v105 = vld [vmem:[%s1 + $0x170] sm:$0xff]
  %v106 = vld [vmem:[%s1 + $0x178] sm:$0xff]
  %v107 = vld [vmem:[%s1 + $0x180] sm:$0xff]
  %v108 = vld [vmem:[%s1 + $0x188] sm:$0xff]
  %v109 = vld [vmem:[%s1 + $0x190] sm:$0xff]
  %v110 = vld [vmem:[%s1 + $0x198] sm:$0xff]
  %v111 = vld [vmem:[%s1 + $0x1a0] sm:$0xff]
  %v112 = vld [vmem:[%s1 + $0x1a8] sm:$0xff]
  %v113 = vld [vmem:[%s1 + $0x1b0] sm:$0xff]
  %v114 = vld [vmem:[%s1 + $0x1b8] sm:$0xff]
  %v115 = vld [vmem:[%s1 + $0x1c0] sm:$0xff]
  %v116 = vld [vmem:[%s1 + $0x1c8] sm:$0xff]
  %v117 = vld [vmem:[%s1 + $0x1d0] sm:$0xff]
  %v118 = vld [vmem:[%s1 + $0x1d8] sm:$0xff]
  %v119 = vld [vmem:[%s1 + $0x1e0] sm:$0xff]
  %v120 = vld [vmem:[%s1 + $0x1e8] sm:$0xff]
  %v121 = vld [vmem:[%s1 + $0x1f0] sm:$0xff]
  %v122 = vld [vmem:[%s1 + $0x1f8] sm:$0xff]
  %v123 = vld [vmem:[%s1 + $0x200] sm:$0xff]
  %v124 = vld [vmem:[%s1 + $0x208] sm:$0xff]
  %v125 = vld [vmem:[%s1 + $0x210] sm:$0xff]
  %v126 = vld [vmem:[%s1 + $0x218] sm:$0xff]
  %v127 = vld [vmem:[%s1 + $0x220] sm:$0xff]
  %v128 = vld [vmem:[%s1 + $0x228] sm:$0xff]
  %v129 = vld [vmem:[%s1 + $0x230] sm:$0xff]
  %v130 = vld [vmem:[%s1 + $0x238] sm:$0xff]
  %v131 = vld [vmem:[%s1 + $0x240] sm:$0xff]
  %v132 = vld [vmem:[%s1 + $0x248] sm:$0xff]
  %v133 = vld [vmem:[%s1 + $0x250] sm:$0xff]
  %v134 = vld [vmem:[%s1 + $0x258] sm:$0xff]
  %v135 = vld [vmem:[%s1 + $0x260] sm:$0xff]
  %v136 = vld [vmem:[%s1 + $0x268] sm:$0xff]
  %v137 = vld [vmem:[%s1 + $0x270] sm:$0xff]
  %v138 = vld [vmem:[%s1 + $0x278] sm:$0xff]
  %v139 = vld [vmem:[%s1 + $0x280] sm:$0xff]
  %v140 = vld [vmem:[%s1 + $0x288] sm:$0xff]
  %v141 = vld [vmem:[%s1 + $0x290] sm:$0xff]
  %v142 = vld [vmem:[%s1 + $0x298] sm:$0xff]
  %v143 = vld [vmem:[%s1 + $0x2a0] sm:$0xff]
  %v144 = vld [vmem:[%s1 + $0x2a8] sm:$0xff]
  %v145 = vld [vmem:[%s1 + $0x2b0] sm:$0xff]
  %v146 = vld [vmem:[%s1 + $0x2b8] sm:$0xff]
  %v147 = vld [vmem:[%s1 + $0x2c0] sm:$0xff]
  %v148 = vld [vmem:[%s1 + $0x2c8] sm:$0xff]
  %v149 = vld [vmem:[%s1 + $0x2d0] sm:$0xff]
  %v150 = vld [vmem:[%s1 + $0x2d8] sm:$0xff]
  %v151 = vld [vmem:[%s1 + $0x2e0] sm:$0xff]
  %v152 = vld [vmem:[%s1 + $0x2e8] sm:$0xff]
  %v153 = vld [vmem:[%s1 + $0x2f0] sm:$0xff]
  %v154 = vld [vmem:[%s1 + $0x2f8] sm:$0xff]
  %v155 = vld [vmem:[%s1 + $0x300] sm:$0xff]
  %v156 = vld [vmem:[%s1 + $0x308] sm:$0xff]
  %v157 = vld [vmem:[%s1 + $0x310] sm:$0xff]
  %v158 = vld [vmem:[%s1 + $0x318] sm:$0xff]
  %v159 = vld [vmem:[%s1 + $0x320] sm:$0xff]
  %v160 = vld [vmem:[%s1 + $0x328] sm:$0xff]
  %v161 = vld [vmem:[%s1 + $0x330] sm:$0xff]
  %v162 = vld [vmem:[%s1 + $0x338] sm:$0xff]
  %v163 = vld [vmem:[%s1 + $0x340] sm:$0xff]
  %v164 = vld [vmem:[%s1 + $0x348] sm:$0xff]
  %v165 = vld [vmem:[%s1 + $0x350] sm:$0xff]
  %v166 = vld [vmem:[%s1 + $0x358] sm:$0xff]
  %v167 = vld [vmem:[%s1 + $0x360] sm:$0xff]
  %v168 = vld [vmem:[%s1 + $0x368] sm:$0xff]
  %v169 = vld [vmem:[%s1 + $0x370] sm:$0xff]
  %v170 = vld [vmem:[%s1 + $0x378] sm:$0xff]
  %v171 = vld [vmem:[%s1 + $0x380] sm:$0xff]
  %v172 = vld [vmem:[%s1 + $0x388] sm:$0xff]
  %v173 = vld [vmem:[%s1 + $0x390] sm:$0xff]
  %v174 = vld [vmem:[%s1 + $0x398] sm:$0xff]
  %v175 = vld [vmem:[%s1 + $0x3a0] sm:$0xff]
  %v176 = vld [vmem:[%s1 + $0x3a8] sm:$0xff]
  %v177 = vld [vmem:[%s1 + $0x3b0] sm:$0xff]
  %v178 = vld [vmem:[%s1 + $0x3b8] sm:$0xff]
  %v179 = vld [vmem:[%s1 + $0x3c0] sm:$0xff]
  %v180 = vld [vmem:[%s1 + $0x3c8] sm:$0xff]
  %v181 = vld [vmem:[%s1 + $0x3d0] sm:$0xff]
  %v182 = vld [vmem:[%s1 + $0x3d8] sm:$0xff]
  %v183 = vld [vmem:[%s1 + $0x3e0] sm:$0xff]
  %v184 = vld [vmem:[%s1 + $0x3e8] sm:$0xff]
  %v185 = vld [vmem:[%s1 + $0x3f0] sm:$0xff]
  %v186 = vld [vmem:[%s1 + $0x3f8] sm:$0xff]
  %v187 = vld [vmem:[%s1 + $0x400] sm:$0xff]
  %v188 = vld [vmem:[%s1 + $0x408] sm:$0xff]
  %v189 = vld [vmem:[%s1 + $0x410] sm:$0xff]
  %v190 = vld [vmem:[%s1 + $0x418] sm:$0xff]
  %v191 = vld [vmem:[%s1 + $0x420] sm:$0xff]
  %v192 = vld [vmem:[%s1 + $0x428] sm:$0xff]
  %v193 = vld [vmem:[%s1 + $0x430] sm:$0xff]
  %v194 = vld [vmem:[%s1 + $0x438] sm:$0xff]
  %v195 = vld [vmem:[%s1 + $0x440] sm:$0xff]
  %v196 = vld [vmem:[%s1 + $0x448] sm:$0xff]
  %v197 = vld [vmem:[%s1 + $0x450] sm:$0xff]
  %v198 = vld [vmem:[%s1 + $0x458] sm:$0xff]
  %v199 = vld [vmem:[%s1 + $0x460] sm:$0xff]
  %v200 = vld [vmem:[%s1 + $0x468] sm:$0xff]
  %v201 = vld [vmem:[%s1 + $0x470] sm:$0xff]
  %v202 = vld [vmem:[%s1 + $0x478] sm:$0xff]
  %v203 = vld [vmem:[%s1 + $0x480] sm:$0xff]
  %v204 = vld [vmem:[%s1 + $0x488] sm:$0xff]
  %v205 = vld [vmem:[%s1 + $0x490] sm:$0xff]
  %v206 = vld [vmem:[%s1 + $0x498] sm:$0xff]
  %v207 = vld [vmem:[%s1 + $0x4a0] sm:$0xff]
  %v208 = vld [vmem:[%s1 + $0x4a8] sm:$0xff]
  %v209 = vld [vmem:[%s1 + $0x4b0] sm:$0xff]
  %v210 = vld [vmem:[%s1 + $0x4b8] sm:$0xff]
  %v211 = vld [vmem:[%s1 + $0x4c0] sm:$0xff]
  %v212 = vld [vmem:[%s1 + $0x4c8] sm:$0xff]
  %v213 = vld [vmem:[%s1 + $0x4d0] sm:$0xff]
  %v214 = vld [vmem:[%s1 + $0x4d8] sm:$0xff]
  %v215 = vld [vmem:[%s1 + $0x4e0] sm:$0xff]
  %v216 = vld [vmem:[%s1 + $0x4e8] sm:$0xff]
  %v217 = vld [vmem:[%s1 + $0x4f0] sm:$0xff]
  %v218 = vld [vmem:[%s1 + $0x4f8] sm:$0xff]
  %v219 = vld [vmem:[%s1 + $0x500] sm:$0xff]
  %v220 = vld [vmem:[%s1 + $0x508] sm:$0xff]
  %v221 = vld [vmem:[%s1 + $0x510] sm:$0xff]
  %v222 = vld [vmem:[%s1 + $0x518] sm:$0xff]
  %v223 = vld [vmem:[%s1 + $0x520] sm:$0xff]
  %v224 = vld [vmem:[%s1 + $0x528] sm:$0xff]
  %v225 = vld [vmem:[%s1 + $0x530] sm:$0xff]
  %v226 = vld [vmem:[%s1 + $0x538] sm:$0xff]
  %v227 = vld [vmem:[%s1 + $0x540] sm:$0xff]
  %v228 = vld [vmem:[%s1 + $0x548] sm:$0xff]
  %v229 = vld [vmem:[%s1 + $0x550] sm:$0xff]
  %v230 = vld [vmem:[%s1 + $0x558] sm:$0xff]
  %v231 = vld [vmem:[%s1 + $0x560] sm:$0xff]
  %v232 = vld [vmem:[%s1 + $0x568] sm:$0xff]
  %v233 = vld [vmem:[%s1 + $0x570] sm:$0xff]
  %v234 = vld [vmem:[%s1 + $0x578] sm:$0xff]
  %v235 = vld [vmem:[%s1 + $0x580] sm:$0xff]
  %v236 = vld [vmem:[%s1 + $0x588] sm:$0xff]
  %v237 = vld [vmem:[%s1 + $0x590] sm:$0xff]
  %v238 = vld [vmem:[%s1 + $0x598] sm:$0xff]
  %v239 = vld [vmem:[%s1 + $0x5a0] sm:$0xff]
  %v240 = vld [vmem:[%s1 + $0x5a8] sm:$0xff]
  %v241 = vld [vmem:[%s1 + $0x5b0] sm:$0xff]
  %v242 = vld [vmem:[%s1 + $0x5b8] sm:$0xff]
  %v243 = vld [vmem:[%s1 + $0x5c0] sm:$0xff]
  %v244 = vld [vmem:[%s1 + $0x5c8] sm:$0xff]
  %v245 = vld [vmem:[%s1 + $0x5d0] sm:$0xff]
  %v246 = vld [vmem:[%s1 + $0x5d8] sm:$0xff]
  %v247 = vld [vmem:[%s1 + $0x5e0] sm:$0xff]
  %v248 = vld [vmem:[%s1 + $0x5e8] sm:$0xff]
  %v249 = vld [vmem:[%s1 + $0x5f0] sm:$0xff]
  %v250 = vld [vmem:[%s1 + $0x5f8] sm:$0xff]
  %v251 = vld [vmem:[%s2] sm:$0xf]
  %v253 = vlaneseq
  %v254 = vshrl.u32 %v253, 7
  %v255 = vsub.s32 0, %v254
  %v256 = vrot.slane %v251, %v255
  %v257 = vlaneseq
  %v258 = vshrl.u32 %v257, 7
  %v259 = vsub.s32 1, %v258
  %v260 = vrot.slane %v251, %v259
  %v261 = vlaneseq
  %v262 = vshrl.u32 %v261, 7
  %v263 = vsub.s32 2, %v262
  %v264 = vrot.slane %v251, %v263
  %v265 = vlaneseq
  %v266 = vshrl.u32 %v265, 7
  %v267 = vsub.s32 3, %v266
  %v268 = vrot.slane %v251, %v267
  %v279 = vunpack.c.l.b16 %v53
  %v280 = vunpack.c.h.b16 %v53
  %v281 = vunpack.c.l.b16 %v54
  %v282 = vunpack.c.h.b16 %v54
  %v283 = vunpack.c.l.b16 %v55
  %v284 = vunpack.c.h.b16 %v55
  %v285 = vunpack.c.l.b16 %v56
  %v286 = vunpack.c.h.b16 %v56
  %v287 = vunpack.c.l.b16 %v57
  %v288 = vunpack.c.h.b16 %v57
  %v289 = vunpack.c.l.b16 %v58
  %v290 = vunpack.c.h.b16 %v58
  %v291 = vpack.c.b16 %v285, %v279
  %v292 = vpack.c.b16 %v286, %v280
  %v293 = vpack.c.b16 %v287, %v281
  %v294 = vpack.c.b16 %v288, %v282
  %v295 = vpack.c.b16 %v289, %v283
  %v296 = vpack.c.b16 %v290, %v284
  %v495 = vunpack.c.l.b16 %v59
  %v496 = vunpack.c.h.b16 %v59
  %v497 = vunpack.c.l.b16 %v60
  %v498 = vunpack.c.h.b16 %v60
  %v499 = vunpack.c.l.b16 %v61
  %v500 = vunpack.c.h.b16 %v61
  %v501 = vunpack.c.l.b16 %v62
  %v502 = vunpack.c.h.b16 %v62
  %v503 = vunpack.c.l.b16 %v63
  %v504 = vunpack.c.h.b16 %v63
  %v505 = vunpack.c.l.b16 %v64
  %v506 = vunpack.c.h.b16 %v64
  %v507 = vunpack.c.l.b16 %v65
  %v508 = vunpack.c.h.b16 %v65
  %v509 = vunpack.c.l.b16 %v66
  %v510 = vunpack.c.h.b16 %v66
  %v511 = vunpack.c.l.b16 %v67
  %v512 = vunpack.c.h.b16 %v67
  %v513 = vunpack.c.l.b16 %v68
  %v514 = vunpack.c.h.b16 %v68
  %v515 = vunpack.c.l.b16 %v69
  %v516 = vunpack.c.h.b16 %v69
  %v517 = vunpack.c.l.b16 %v70
  %v518 = vunpack.c.h.b16 %v70
  %v519 = vunpack.c.l.b16 %v71
  %v520 = vunpack.c.h.b16 %v71
  %v521 = vunpack.c.l.b16 %v72
  %v522 = vunpack.c.h.b16 %v72
  %v523 = vunpack.c.l.b16 %v73
  %v524 = vunpack.c.h.b16 %v73
  %v525 = vunpack.c.l.b16 %v74
  %v526 = vunpack.c.h.b16 %v74
  %v527 = vunpack.c.l.b16 %v75
  %v528 = vunpack.c.h.b16 %v75
  %v529 = vunpack.c.l.b16 %v76
  %v530 = vunpack.c.h.b16 %v76
  %v531 = vunpack.c.l.b16 %v77
  %v532 = vunpack.c.h.b16 %v77
  %v533 = vunpack.c.l.b16 %v78
  %v534 = vunpack.c.h.b16 %v78
  %v535 = vunpack.c.l.b16 %v79
  %v536 = vunpack.c.h.b16 %v79
  %v537 = vunpack.c.l.b16 %v80
  %v538 = vunpack.c.h.b16 %v80
  %v539 = vunpack.c.l.b16 %v81
  %v540 = vunpack.c.h.b16 %v81
  %v541 = vunpack.c.l.b16 %v82
  %v542 = vunpack.c.h.b16 %v82
  %v543 = vunpack.c.l.b16 %v83
  %v544 = vunpack.c.h.b16 %v83
  %v545 = vunpack.c.l.b16 %v84
  %v546 = vunpack.c.h.b16 %v84
  %v547 = vunpack.c.l.b16 %v85
  %v548 = vunpack.c.h.b16 %v85
  %v549 = vunpack.c.l.b16 %v86
  %v550 = vunpack.c.h.b16 %v86
  %v551 = vunpack.c.l.b16 %v87
  %v552 = vunpack.c.h.b16 %v87
  %v553 = vunpack.c.l.b16 %v88
  %v554 = vunpack.c.h.b16 %v88
  %v555 = vunpack.c.l.b16 %v89
  %v556 = vunpack.c.h.b16 %v89
  %v557 = vunpack.c.l.b16 %v90
  %v558 = vunpack.c.h.b16 %v90
  %v559 = vunpack.c.l.b16 %v91
  %v560 = vunpack.c.h.b16 %v91
  %v561 = vunpack.c.l.b16 %v92
  %v562 = vunpack.c.h.b16 %v92
  %v563 = vunpack.c.l.b16 %v93
  %v564 = vunpack.c.h.b16 %v93
  %v565 = vunpack.c.l.b16 %v94
  %v566 = vunpack.c.h.b16 %v94
  %v567 = vunpack.c.l.b16 %v95
  %v568 = vunpack.c.h.b16 %v95
  %v569 = vunpack.c.l.b16 %v96
  %v570 = vunpack.c.h.b16 %v96
  %v571 = vunpack.c.l.b16 %v97
  %v572 = vunpack.c.h.b16 %v97
  %v573 = vunpack.c.l.b16 %v98
  %v574 = vunpack.c.h.b16 %v98
  %v575 = vunpack.c.l.b16 %v99
  %v576 = vunpack.c.h.b16 %v99
  %v577 = vunpack.c.l.b16 %v100
  %v578 = vunpack.c.h.b16 %v100
  %v579 = vunpack.c.l.b16 %v101
  %v580 = vunpack.c.h.b16 %v101
  %v581 = vunpack.c.l.b16 %v102
  %v582 = vunpack.c.h.b16 %v102
  %v583 = vunpack.c.l.b16 %v103
  %v584 = vunpack.c.h.b16 %v103
  %v585 = vunpack.c.l.b16 %v104
  %v586 = vunpack.c.h.b16 %v104
  %v587 = vunpack.c.l.b16 %v105
  %v588 = vunpack.c.h.b16 %v105
  %v589 = vunpack.c.l.b16 %v106
  %v590 = vunpack.c.h.b16 %v106
  %v591 = vunpack.c.l.b16 %v107
  %v592 = vunpack.c.h.b16 %v107
  %v593 = vunpack.c.l.b16 %v108
  %v594 = vunpack.c.h.b16 %v108
  %v595 = vunpack.c.l.b16 %v109
  %v596 = vunpack.c.h.b16 %v109
  %v597 = vunpack.c.l.b16 %v110
  %v598 = vunpack.c.h.b16 %v110
  %v599 = vunpack.c.l.b16 %v111
  %v600 = vunpack.c.h.b16 %v111
  %v601 = vunpack.c.l.b16 %v112
  %v602 = vunpack.c.h.b16 %v112
  %v603 = vunpack.c.l.b16 %v113
  %v604 = vunpack.c.h.b16 %v113
  %v605 = vunpack.c.l.b16 %v114
  %v606 = vunpack.c.h.b16 %v114
  %v607 = vunpack.c.l.b16 %v115
  %v608 = vunpack.c.h.b16 %v115
  %v609 = vunpack.c.l.b16 %v116
  %v610 = vunpack.c.h.b16 %v116
  %v611 = vunpack.c.l.b16 %v117
  %v612 = vunpack.c.h.b16 %v117
  %v613 = vunpack.c.l.b16 %v118
  %v614 = vunpack.c.h.b16 %v118
  %v615 = vunpack.c.l.b16 %v119
  %v616 = vunpack.c.h.b16 %v119
  %v617 = vunpack.c.l.b16 %v120
  %v618 = vunpack.c.h.b16 %v120
  %v619 = vunpack.c.l.b16 %v121
  %v620 = vunpack.c.h.b16 %v121
  %v621 = vunpack.c.l.b16 %v122
  %v622 = vunpack.c.h.b16 %v122
  %v623 = vunpack.c.l.b16 %v123
  %v624 = vunpack.c.h.b16 %v123
  %v625 = vunpack.c.l.b16 %v124
  %v626 = vunpack.c.h.b16 %v124
  %v627 = vunpack.c.l.b16 %v125
  %v628 = vunpack.c.h.b16 %v125
  %v629 = vunpack.c.l.b16 %v126
  %v630 = vunpack.c.h.b16 %v126
  %v631 = vunpack.c.l.b16 %v127
  %v632 = vunpack.c.h.b16 %v127
  %v633 = vunpack.c.l.b16 %v128
  %v634 = vunpack.c.h.b16 %v128
  %v635 = vunpack.c.l.b16 %v129
  %v636 = vunpack.c.h.b16 %v129
  %v637 = vunpack.c.l.b16 %v130
  %v638 = vunpack.c.h.b16 %v130
  %v639 = vunpack.c.l.b16 %v131
  %v640 = vunpack.c.h.b16 %v131
  %v641 = vunpack.c.l.b16 %v132
  %v642 = vunpack.c.h.b16 %v132
  %v643 = vunpack.c.l.b16 %v133
  %v644 = vunpack.c.h.b16 %v133
  %v645 = vunpack.c.l.b16 %v134
  %v646 = vunpack.c.h.b16 %v134
  %v647 = vunpack.c.l.b16 %v135
  %v648 = vunpack.c.h.b16 %v135
  %v649 = vunpack.c.l.b16 %v136
  %v650 = vunpack.c.h.b16 %v136
  %v651 = vunpack.c.l.b16 %v137
  %v652 = vunpack.c.h.b16 %v137
  %v653 = vunpack.c.l.b16 %v138
  %v654 = vunpack.c.h.b16 %v138
  %v655 = vunpack.c.l.b16 %v139
  %v656 = vunpack.c.h.b16 %v139
  %v657 = vunpack.c.l.b16 %v140
  %v658 = vunpack.c.h.b16 %v140
  %v659 = vunpack.c.l.b16 %v141
  %v660 = vunpack.c.h.b16 %v141
  %v661 = vunpack.c.l.b16 %v142
  %v662 = vunpack.c.h.b16 %v142
  %v663 = vunpack.c.l.b16 %v143
  %v664 = vunpack.c.h.b16 %v143
  %v665 = vunpack.c.l.b16 %v144
  %v666 = vunpack.c.h.b16 %v144
  %v667 = vunpack.c.l.b16 %v145
  %v668 = vunpack.c.h.b16 %v145
  %v669 = vunpack.c.l.b16 %v146
  %v670 = vunpack.c.h.b16 %v146
  %v671 = vunpack.c.l.b16 %v147
  %v672 = vunpack.c.h.b16 %v147
  %v673 = vunpack.c.l.b16 %v148
  %v674 = vunpack.c.h.b16 %v148
  %v675 = vunpack.c.l.b16 %v149
  %v676 = vunpack.c.h.b16 %v149
  %v677 = vunpack.c.l.b16 %v150
  %v678 = vunpack.c.h.b16 %v150
  %v679 = vunpack.c.l.b16 %v151
  %v680 = vunpack.c.h.b16 %v151
  %v681 = vunpack.c.l.b16 %v152
  %v682 = vunpack.c.h.b16 %v152
  %v683 = vunpack.c.l.b16 %v153
  %v684 = vunpack.c.h.b16 %v153
  %v685 = vunpack.c.l.b16 %v154
  %v686 = vunpack.c.h.b16 %v154
  %v687 = vunpack.c.l.b16 %v155
  %v688 = vunpack.c.h.b16 %v155
  %v689 = vunpack.c.l.b16 %v156
  %v690 = vunpack.c.h.b16 %v156
  %v691 = vunpack.c.l.b16 %v157
  %v692 = vunpack.c.h.b16 %v157
  %v693 = vunpack.c.l.b16 %v158
  %v694 = vunpack.c.h.b16 %v158
  %v695 = vunpack.c.l.b16 %v159
  %v696 = vunpack.c.h.b16 %v159
  %v697 = vunpack.c.l.b16 %v160
  %v698 = vunpack.c.h.b16 %v160
  %v699 = vunpack.c.l.b16 %v161
  %v700 = vunpack.c.h.b16 %v161
  %v701 = vunpack.c.l.b16 %v162
  %v702 = vunpack.c.h.b16 %v162
  %v703 = vunpack.c.l.b16 %v163
  %v704 = vunpack.c.h.b16 %v163
  %v705 = vunpack.c.l.b16 %v164
  %v706 = vunpack.c.h.b16 %v164
  %v707 = vunpack.c.l.b16 %v165
  %v708 = vunpack.c.h.b16 %v165
  %v709 = vunpack.c.l.b16 %v166
  %v710 = vunpack.c.h.b16 %v166
  %v711 = vunpack.c.l.b16 %v167
  %v712 = vunpack.c.h.b16 %v167
  %v713 = vunpack.c.l.b16 %v168
  %v714 = vunpack.c.h.b16 %v168
  %v715 = vunpack.c.l.b16 %v169
  %v716 = vunpack.c.h.b16 %v169
  %v717 = vunpack.c.l.b16 %v170
  %v718 = vunpack.c.h.b16 %v170
  %v719 = vunpack.c.l.b16 %v171
  %v720 = vunpack.c.h.b16 %v171
  %v721 = vunpack.c.l.b16 %v172
  %v722 = vunpack.c.h.b16 %v172
  %v723 = vunpack.c.l.b16 %v173
  %v724 = vunpack.c.h.b16 %v173
  %v725 = vunpack.c.l.b16 %v174
  %v726 = vunpack.c.h.b16 %v174
  %v727 = vunpack.c.l.b16 %v175
  %v728 = vunpack.c.h.b16 %v175
  %v729 = vunpack.c.l.b16 %v176
  %v730 = vunpack.c.h.b16 %v176
  %v731 = vunpack.c.l.b16 %v177
  %v732 = vunpack.c.h.b16 %v177
  %v733 = vunpack.c.l.b16 %v178
  %v734 = vunpack.c.h.b16 %v178
  %v735 = vunpack.c.l.b16 %v179
  %v736 = vunpack.c.h.b16 %v179
  %v737 = vunpack.c.l.b16 %v180
  %v738 = vunpack.c.h.b16 %v180
  %v739 = vunpack.c.l.b16 %v181
  %v740 = vunpack.c.h.b16 %v181
  %v741 = vunpack.c.l.b16 %v182
  %v742 = vunpack.c.h.b16 %v182
  %v743 = vunpack.c.l.b16 %v183
  %v744 = vunpack.c.h.b16 %v183
  %v745 = vunpack.c.l.b16 %v184
  %v746 = vunpack.c.h.b16 %v184
  %v747 = vunpack.c.l.b16 %v185
  %v748 = vunpack.c.h.b16 %v185
  %v749 = vunpack.c.l.b16 %v186
  %v750 = vunpack.c.h.b16 %v186
  %v751 = vunpack.c.l.b16 %v187
  %v752 = vunpack.c.h.b16 %v187
  %v753 = vunpack.c.l.b16 %v188
  %v754 = vunpack.c.h.b16 %v188
  %v755 = vunpack.c.l.b16 %v189
  %v756 = vunpack.c.h.b16 %v189
  %v757 = vunpack.c.l.b16 %v190
  %v758 = vunpack.c.h.b16 %v190
  %v759 = vunpack.c.l.b16 %v191
  %v760 = vunpack.c.h.b16 %v191
  %v761 = vunpack.c.l.b16 %v192
  %v762 = vunpack.c.h.b16 %v192
  %v763 = vunpack.c.l.b16 %v193
  %v764 = vunpack.c.h.b16 %v193
  %v765 = vunpack.c.l.b16 %v194
  %v766 = vunpack.c.h.b16 %v194
  %v767 = vunpack.c.l.b16 %v195
  %v768 = vunpack.c.h.b16 %v195
  %v769 = vunpack.c.l.b16 %v196
  %v770 = vunpack.c.h.b16 %v196
  %v771 = vunpack.c.l.b16 %v197
  %v772 = vunpack.c.h.b16 %v197
  %v773 = vunpack.c.l.b16 %v198
  %v774 = vunpack.c.h.b16 %v198
  %v775 = vunpack.c.l.b16 %v199
  %v776 = vunpack.c.h.b16 %v199
  %v777 = vunpack.c.l.b16 %v200
  %v778 = vunpack.c.h.b16 %v200
  %v779 = vunpack.c.l.b16 %v201
  %v780 = vunpack.c.h.b16 %v201
  %v781 = vunpack.c.l.b16 %v202
  %v782 = vunpack.c.h.b16 %v202
  %v783 = vunpack.c.l.b16 %v203
  %v784 = vunpack.c.h.b16 %v203
  %v785 = vunpack.c.l.b16 %v204
  %v786 = vunpack.c.h.b16 %v204
  %v787 = vunpack.c.l.b16 %v205
  %v788 = vunpack.c.h.b16 %v205
  %v789 = vunpack.c.l.b16 %v206
  %v790 = vunpack.c.h.b16 %v206
  %v791 = vunpack.c.l.b16 %v207
  %v792 = vunpack.c.h.b16 %v207
  %v793 = vunpack.c.l.b16 %v208
  %v794 = vunpack.c.h.b16 %v208
  %v795 = vunpack.c.l.b16 %v209
  %v796 = vunpack.c.h.b16 %v209
  %v797 = vunpack.c.l.b16 %v210
  %v798 = vunpack.c.h.b16 %v210
  %v799 = vunpack.c.l.b16 %v211
  %v800 = vunpack.c.h.b16 %v211
  %v801 = vunpack.c.l.b16 %v212
  %v802 = vunpack.c.h.b16 %v212
  %v803 = vunpack.c.l.b16 %v213
  %v804 = vunpack.c.h.b16 %v213
  %v805 = vunpack.c.l.b16 %v214
  %v806 = vunpack.c.h.b16 %v214
  %v807 = vunpack.c.l.b16 %v215
  %v808 = vunpack.c.h.b16 %v215
  %v809 = vunpack.c.l.b16 %v216
  %v810 = vunpack.c.h.b16 %v216
  %v811 = vunpack.c.l.b16 %v217
  %v812 = vunpack.c.h.b16 %v217
  %v813 = vunpack.c.l.b16 %v218
  %v814 = vunpack.c.h.b16 %v218
  %v815 = vunpack.c.l.b16 %v219
  %v816 = vunpack.c.h.b16 %v219
  %v817 = vunpack.c.l.b16 %v220
  %v818 = vunpack.c.h.b16 %v220
  %v819 = vunpack.c.l.b16 %v221
  %v820 = vunpack.c.h.b16 %v221
  %v821 = vunpack.c.l.b16 %v222
  %v822 = vunpack.c.h.b16 %v222
  %v823 = vunpack.c.l.b16 %v223
  %v824 = vunpack.c.h.b16 %v223
  %v825 = vunpack.c.l.b16 %v224
  %v826 = vunpack.c.h.b16 %v224
  %v827 = vunpack.c.l.b16 %v225
  %v828 = vunpack.c.h.b16 %v225
  %v829 = vunpack.c.l.b16 %v226
  %v830 = vunpack.c.h.b16 %v226
  %v831 = vunpack.c.l.b16 %v227
  %v832 = vunpack.c.h.b16 %v227
  %v833 = vunpack.c.l.b16 %v228
  %v834 = vunpack.c.h.b16 %v228
  %v835 = vunpack.c.l.b16 %v229
  %v836 = vunpack.c.h.b16 %v229
  %v837 = vunpack.c.l.b16 %v230
  %v838 = vunpack.c.h.b16 %v230
  %v839 = vunpack.c.l.b16 %v231
  %v840 = vunpack.c.h.b16 %v231
  %v841 = vunpack.c.l.b16 %v232
  %v842 = vunpack.c.h.b16 %v232
  %v843 = vunpack.c.l.b16 %v233
  %v844 = vunpack.c.h.b16 %v233
  %v845 = vunpack.c.l.b16 %v234
  %v846 = vunpack.c.h.b16 %v234
  %v847 = vunpack.c.l.b16 %v235
  %v848 = vunpack.c.h.b16 %v235
  %v849 = vunpack.c.l.b16 %v236
  %v850 = vunpack.c.h.b16 %v236
  %v851 = vunpack.c.l.b16 %v237
  %v852 = vunpack.c.h.b16 %v237
  %v853 = vunpack.c.l.b16 %v238
  %v854 = vunpack.c.h.b16 %v238
  %v855 = vunpack.c.l.b16 %v239
  %v856 = vunpack.c.h.b16 %v239
  %v857 = vunpack.c.l.b16 %v240
  %v858 = vunpack.c.h.b16 %v240
  %v859 = vunpack.c.l.b16 %v241
  %v860 = vunpack.c.h.b16 %v241
  %v861 = vunpack.c.l.b16 %v242
  %v862 = vunpack.c.h.b16 %v242
  %v863 = vunpack.c.l.b16 %v243
  %v864 = vunpack.c.h.b16 %v243
  %v865 = vunpack.c.l.b16 %v244
  %v866 = vunpack.c.h.b16 %v244
  %v867 = vunpack.c.l.b16 %v245
  %v868 = vunpack.c.h.b16 %v245
  %v869 = vunpack.c.l.b16 %v246
  %v870 = vunpack.c.h.b16 %v246
  %v871 = vunpack.c.l.b16 %v247
  %v872 = vunpack.c.h.b16 %v247
  %v873 = vunpack.c.l.b16 %v248
  %v874 = vunpack.c.h.b16 %v248
  %v875 = vunpack.c.l.b16 %v249
  %v876 = vunpack.c.h.b16 %v249
  %v877 = vunpack.c.l.b16 %v250
  %v878 = vunpack.c.h.b16 %v250
  %v879 = vpack.c.b16 %v499, %v495
  %v880 = vpack.c.b16 %v500, %v496
  %v881 = vpack.c.b16 %v501, %v497
  %v882 = vpack.c.b16 %v502, %v498
  %v883 = vpack.c.b16 %v507, %v503
  %v884 = vpack.c.b16 %v508, %v504
  %v885 = vpack.c.b16 %v509, %v505
  %v886 = vpack.c.b16 %v510, %v506
  %v887 = vpack.c.b16 %v515, %v511
  %v888 = vpack.c.b16 %v516, %v512
  %v889 = vpack.c.b16 %v517, %v513
  %v890 = vpack.c.b16 %v518, %v514
  %v891 = vpack.c.b16 %v523, %v519
  %v892 = vpack.c.b16 %v524, %v520
  %v893 = vpack.c.b16 %v525, %v521
  %v894 = vpack.c.b16 %v526, %v522
  %v895 = vpack.c.b16 %v531, %v527
  %v896 = vpack.c.b16 %v532, %v528
  %v897 = vpack.c.b16 %v533, %v529
  %v898 = vpack.c.b16 %v534, %v530
  %v899 = vpack.c.b16 %v539, %v535
  %v900 = vpack.c.b16 %v540, %v536
  %v901 = vpack.c.b16 %v541, %v537
  %v902 = vpack.c.b16 %v542, %v538
  %v903 = vpack.c.b16 %v547, %v543
  %v904 = vpack.c.b16 %v548, %v544
  %v905 = vpack.c.b16 %v549, %v545
  %v906 = vpack.c.b16 %v550, %v546
  %v907 = vpack.c.b16 %v555, %v551
  %v908 = vpack.c.b16 %v556, %v552
  %v909 = vpack.c.b16 %v557, %v553
  %v910 = vpack.c.b16 %v558, %v554
  %v911 = vpack.c.b16 %v563, %v559
  %v912 = vpack.c.b16 %v564, %v560
  %v913 = vpack.c.b16 %v565, %v561
  %v914 = vpack.c.b16 %v566, %v562
  %v915 = vpack.c.b16 %v571, %v567
  %v916 = vpack.c.b16 %v572, %v568
  %v917 = vpack.c.b16 %v573, %v569
  %v918 = vpack.c.b16 %v574, %v570
  %v919 = vpack.c.b16 %v579, %v575
  %v920 = vpack.c.b16 %v580, %v576
  %v921 = vpack.c.b16 %v581, %v577
  %v922 = vpack.c.b16 %v582, %v578
  %v923 = vpack.c.b16 %v587, %v583
  %v924 = vpack.c.b16 %v588, %v584
  %v925 = vpack.c.b16 %v589, %v585
  %v926 = vpack.c.b16 %v590, %v586
  %v927 = vpack.c.b16 %v595, %v591
  %v928 = vpack.c.b16 %v596, %v592
  %v929 = vpack.c.b16 %v597, %v593
  %v930 = vpack.c.b16 %v598, %v594
  %v931 = vpack.c.b16 %v603, %v599
  %v932 = vpack.c.b16 %v604, %v600
  %v933 = vpack.c.b16 %v605, %v601
  %v934 = vpack.c.b16 %v606, %v602
  %v935 = vpack.c.b16 %v611, %v607
  %v936 = vpack.c.b16 %v612, %v608
  %v937 = vpack.c.b16 %v613, %v609
  %v938 = vpack.c.b16 %v614, %v610
  %v939 = vpack.c.b16 %v619, %v615
  %v940 = vpack.c.b16 %v620, %v616
  %v941 = vpack.c.b16 %v621, %v617
  %v942 = vpack.c.b16 %v622, %v618
  %v943 = vpack.c.b16 %v627, %v623
  %v944 = vpack.c.b16 %v628, %v624
  %v945 = vpack.c.b16 %v629, %v625
  %v946 = vpack.c.b16 %v630, %v626
  %v947 = vpack.c.b16 %v635, %v631
  %v948 = vpack.c.b16 %v636, %v632
  %v949 = vpack.c.b16 %v637, %v633
  %v950 = vpack.c.b16 %v638, %v634
  %v951 = vpack.c.b16 %v643, %v639
  %v952 = vpack.c.b16 %v644, %v640
  %v953 = vpack.c.b16 %v645, %v641
  %v954 = vpack.c.b16 %v646, %v642
  %v955 = vpack.c.b16 %v651, %v647
  %v956 = vpack.c.b16 %v652, %v648
  %v957 = vpack.c.b16 %v653, %v649
  %v958 = vpack.c.b16 %v654, %v650
  %v959 = vpack.c.b16 %v659, %v655
  %v960 = vpack.c.b16 %v660, %v656
  %v961 = vpack.c.b16 %v661, %v657
  %v962 = vpack.c.b16 %v662, %v658
  %v963 = vpack.c.b16 %v667, %v663
  %v964 = vpack.c.b16 %v668, %v664
  %v965 = vpack.c.b16 %v669, %v665
  %v966 = vpack.c.b16 %v670, %v666
  %v967 = vpack.c.b16 %v675, %v671
  %v968 = vpack.c.b16 %v676, %v672
  %v969 = vpack.c.b16 %v677, %v673
  %v970 = vpack.c.b16 %v678, %v674
  %v971 = vpack.c.b16 %v683, %v679
  %v972 = vpack.c.b16 %v684, %v680
  %v973 = vpack.c.b16 %v685, %v681
  %v974 = vpack.c.b16 %v686, %v682
  %v975 = vpack.c.b16 %v691, %v687
  %v976 = vpack.c.b16 %v692, %v688
  %v977 = vpack.c.b16 %v693, %v689
  %v978 = vpack.c.b16 %v694, %v690
  %v979 = vpack.c.b16 %v699, %v695
  %v980 = vpack.c.b16 %v700, %v696
  %v981 = vpack.c.b16 %v701, %v697
  %v982 = vpack.c.b16 %v702, %v698
  %v983 = vpack.c.b16 %v707, %v703
  %v984 = vpack.c.b16 %v708, %v704
  %v985 = vpack.c.b16 %v709, %v705
  %v986 = vpack.c.b16 %v710, %v706
  %v987 = vpack.c.b16 %v715, %v711
  %v988 = vpack.c.b16 %v716, %v712
  %v989 = vpack.c.b16 %v717, %v713
  %v990 = vpack.c.b16 %v718, %v714
  %v991 = vpack.c.b16 %v723, %v719
  %v992 = vpack.c.b16 %v724, %v720
  %v993 = vpack.c.b16 %v725, %v721
  %v994 = vpack.c.b16 %v726, %v722
  %v995 = vpack.c.b16 %v731, %v727
  %v996 = vpack.c.b16 %v732, %v728
  %v997 = vpack.c.b16 %v733, %v729
  %v998 = vpack.c.b16 %v734, %v730
  %v999 = vpack.c.b16 %v739, %v735
  %v1000 = vpack.c.b16 %v740, %v736
  %v1001 = vpack.c.b16 %v741, %v737
  %v1002 = vpack.c.b16 %v742, %v738
  %v1003 = vpack.c.b16 %v747, %v743
  %v1004 = vpack.c.b16 %v748, %v744
  %v1005 = vpack.c.b16 %v749, %v745
  %v1006 = vpack.c.b16 %v750, %v746
  %v1007 = vpack.c.b16 %v755, %v751
  %v1008 = vpack.c.b16 %v756, %v752
  %v1009 = vpack.c.b16 %v757, %v753
  %v1010 = vpack.c.b16 %v758, %v754
  %v1011 = vpack.c.b16 %v763, %v759
  %v1012 = vpack.c.b16 %v764, %v760
  %v1013 = vpack.c.b16 %v765, %v761
  %v1014 = vpack.c.b16 %v766, %v762
  %v1015 = vpack.c.b16 %v771, %v767
  %v1016 = vpack.c.b16 %v772, %v768
  %v1017 = vpack.c.b16 %v773, %v769
  %v1018 = vpack.c.b16 %v774, %v770
  %v1019 = vpack.c.b16 %v779, %v775
  %v1020 = vpack.c.b16 %v780, %v776
  %v1021 = vpack.c.b16 %v781, %v777
  %v1022 = vpack.c.b16 %v782, %v778
  %v1023 = vpack.c.b16 %v787, %v783
  %v1024 = vpack.c.b16 %v788, %v784
  %v1025 = vpack.c.b16 %v789, %v785
  %v1026 = vpack.c.b16 %v790, %v786
  %v1027 = vpack.c.b16 %v795, %v791
  %v1028 = vpack.c.b16 %v796, %v792
  %v1029 = vpack.c.b16 %v797, %v793
  %v1030 = vpack.c.b16 %v798, %v794
  %v1031 = vpack.c.b16 %v803, %v799
  %v1032 = vpack.c.b16 %v804, %v800
  %v1033 = vpack.c.b16 %v805, %v801
  %v1034 = vpack.c.b16 %v806, %v802
  %v1035 = vpack.c.b16 %v811, %v807
  %v1036 = vpack.c.b16 %v812, %v808
  %v1037 = vpack.c.b16 %v813, %v809
  %v1038 = vpack.c.b16 %v814, %v810
  %v1039 = vpack.c.b16 %v819, %v815
  %v1040 = vpack.c.b16 %v820, %v816
  %v1041 = vpack.c.b16 %v821, %v817
  %v1042 = vpack.c.b16 %v822, %v818
  %v1043 = vpack.c.b16 %v827, %v823
  %v1044 = vpack.c.b16 %v828, %v824
  %v1045 = vpack.c.b16 %v829, %v825
  %v1046 = vpack.c.b16 %v830, %v826
  %v1047 = vpack.c.b16 %v835, %v831
  %v1048 = vpack.c.b16 %v836, %v832
  %v1049 = vpack.c.b16 %v837, %v833
  %v1050 = vpack.c.b16 %v838, %v834
  %v1051 = vpack.c.b16 %v843, %v839
  %v1052 = vpack.c.b16 %v844, %v840
  %v1053 = vpack.c.b16 %v845, %v841
  %v1054 = vpack.c.b16 %v846, %v842
  %v1055 = vpack.c.b16 %v851, %v847
  %v1056 = vpack.c.b16 %v852, %v848
  %v1057 = vpack.c.b16 %v853, %v849
  %v1058 = vpack.c.b16 %v854, %v850
  %v1059 = vpack.c.b16 %v859, %v855
  %v1060 = vpack.c.b16 %v860, %v856
  %v1061 = vpack.c.b16 %v861, %v857
  %v1062 = vpack.c.b16 %v862, %v858
  %v1063 = vpack.c.b16 %v867, %v863
  %v1064 = vpack.c.b16 %v868, %v864
  %v1065 = vpack.c.b16 %v869, %v865
  %v1066 = vpack.c.b16 %v870, %v866
  %v1067 = vpack.c.b16 %v875, %v871
  %v1068 = vpack.c.b16 %v876, %v872
  %v1069 = vpack.c.b16 %v877, %v873
  %v1070 = vpack.c.b16 %v878, %v874
  %1263 = vmatprep.subr.bf16.mxu0 %v880
  %1264 = vmatpush1.bf16.msra.mxu0 %v879
  %1265 = vmatprep.subr.bf16.mxu0 %v884
  %1266 = vmatpush1.bf16.msra.mxu0 %v883
  %1267 = vmatprep.subr.bf16.mxu0 %v888
  %1268 = vmatpush1.bf16.msra.mxu0 %v887
  %1269 = vmatprep.subr.bf16.mxu0 %v892
  %1270 = vmatpush1.bf16.msra.mxu0 %v891
  %1271 = vmatprep.subr.bf16.mxu0 %v896
  %1272 = vmatpush1.bf16.msra.mxu0 %v895
  %1273 = vmatprep.subr.bf16.mxu0 %v900
  %1274 = vmatpush1.bf16.msra.mxu0 %v899
  %1275 = vmatprep.subr.bf16.mxu0 %v904
  %1276 = vmatpush1.bf16.msra.mxu0 %v903
  %1277 = vmatprep.subr.bf16.mxu0 %v908
  %1278 = vmatpush1.bf16.msra.mxu0 %v907
  %1279 = vmatprep.subr.bf16.mxu0 %v912
  %1280 = vmatpush1.bf16.msra.mxu0 %v911
  %1281 = vmatprep.subr.bf16.mxu0 %v916
  %1282 = vmatpush1.bf16.msra.mxu0 %v915
  %1283 = vmatprep.subr.bf16.mxu0 %v920
  %1284 = vmatpush1.bf16.msra.mxu0 %v919
  %1285 = vmatprep.subr.bf16.mxu0 %v924
  %1286 = vmatpush1.bf16.msra.mxu0 %v923
  %1287 = vmatprep.subr.bf16.mxu0 %v928
  %1288 = vmatpush1.bf16.msra.mxu0 %v927
  %1289 = vmatprep.subr.bf16.mxu0 %v932
  %1290 = vmatpush1.bf16.msra.mxu0 %v931
  %1291 = vmatprep.subr.bf16.mxu0 %v936
  %1292 = vmatpush1.bf16.msra.mxu0 %v935
  %1293 = vmatprep.subr.bf16.mxu0 %v940
  %1294 = vmatpush1.bf16.msra.mxu0 %v939
  %1295 = vmatprep.mubr.bf16.mxu0 %v292
  %1296 = vmatmul.mubr.bf16.gmra.mrb[0].mxu0 %v291
  %v1297 = vpop.f32.mrb[0].mxu0
  %v1298 = vadd.f32 %v256, %v1297
  %v1299 = vpop.f32.mrb[0].mxu0
  %v1300 = vadd.f32 %v260, %v1299
  %v1301 = vpop.f32.mrb[0].mxu0
  %v1302 = vadd.f32 %v256, %v1301
  %v1303 = vpop.f32.mrb[0].mxu0
  %v1304 = vadd.f32 %v260, %v1303
  %1305 = vdwg.mxu0
  %1306 = vmatprep.subr.bf16.mxu0 %v944
  %1307 = vmatpush1.bf16.msra.mxu0 %v943
  %1308 = vmatprep.subr.bf16.mxu0 %v948
  %1309 = vmatpush1.bf16.msra.mxu0 %v947
  %1310 = vmatprep.subr.bf16.mxu0 %v952
  %1311 = vmatpush1.bf16.msra.mxu0 %v951
  %1312 = vmatprep.subr.bf16.mxu0 %v956
  %1313 = vmatpush1.bf16.msra.mxu0 %v955
  %1314 = vmatprep.subr.bf16.mxu0 %v960
  %1315 = vmatpush1.bf16.msra.mxu0 %v959
  %1316 = vmatprep.subr.bf16.mxu0 %v964
  %1317 = vmatpush1.bf16.msra.mxu0 %v963
  %1318 = vmatprep.subr.bf16.mxu0 %v968
  %1319 = vmatpush1.bf16.msra.mxu0 %v967
  %1320 = vmatprep.subr.bf16.mxu0 %v972
  %1321 = vmatpush1.bf16.msra.mxu0 %v971
  %1322 = vmatprep.subr.bf16.mxu0 %v976
  %1323 = vmatpush1.bf16.msra.mxu0 %v975
  %1324 = vmatprep.subr.bf16.mxu0 %v980
  %1325 = vmatpush1.bf16.msra.mxu0 %v979
  %1326 = vmatprep.subr.bf16.mxu0 %v984
  %1327 = vmatpush1.bf16.msra.mxu0 %v983
  %1328 = vmatprep.subr.bf16.mxu0 %v988
  %1329 = vmatpush1.bf16.msra.mxu0 %v987
  %1330 = vmatprep.subr.bf16.mxu0 %v992
  %1331 = vmatpush1.bf16.msra.mxu0 %v991
  %1332 = vmatprep.subr.bf16.mxu0 %v996
  %1333 = vmatpush1.bf16.msra.mxu0 %v995
  %1334 = vmatprep.subr.bf16.mxu0 %v1000
  %1335 = vmatpush1.bf16.msra.mxu0 %v999
  %1336 = vmatprep.subr.bf16.mxu0 %v1004
  %1337 = vmatpush1.bf16.msra.mxu0 %v1003
  %1338 = vmatprep.mubr.bf16.mxu0 %v294
  %1339 = vmatmul.mubr.bf16.gmra.mrb[0].mxu0 %v293
  %v1340 = vpop.f32.mrb[0].mxu0
  %v1341 = vadd.f32 %v1298, %v1340
  %v1342 = vpop.f32.mrb[0].mxu0
  %v1343 = vadd.f32 %v1300, %v1342
  %v1344 = vpop.f32.mrb[0].mxu0
  %v1345 = vadd.f32 %v1302, %v1344
  %v1346 = vpop.f32.mrb[0].mxu0
  %v1347 = vadd.f32 %v1304, %v1346
  %1348 = vdwg.mxu0
  %1349 = vmatprep.subr.bf16.mxu0 %v1008
  %1350 = vmatpush1.bf16.msra.mxu0 %v1007
  %1351 = vmatprep.subr.bf16.mxu0 %v1012
  %1352 = vmatpush1.bf16.msra.mxu0 %v1011
  %1353 = vmatprep.subr.bf16.mxu0 %v1016
  %1354 = vmatpush1.bf16.msra.mxu0 %v1015
  %1355 = vmatprep.subr.bf16.mxu0 %v1020
  %1356 = vmatpush1.bf16.msra.mxu0 %v1019
  %1357 = vmatprep.subr.bf16.mxu0 %v1024
  %1358 = vmatpush1.bf16.msra.mxu0 %v1023
  %1359 = vmatprep.subr.bf16.mxu0 %v1028
  %1360 = vmatpush1.bf16.msra.mxu0 %v1027
  %1361 = vmatprep.subr.bf16.mxu0 %v1032
  %1362 = vmatpush1.bf16.msra.mxu0 %v1031
  %1363 = vmatprep.subr.bf16.mxu0 %v1036
  %1364 = vmatpush1.bf16.msra.mxu0 %v1035
  %1365 = vmatprep.subr.bf16.mxu0 %v1040
  %1366 = vmatpush1.bf16.msra.mxu0 %v1039
  %1367 = vmatprep.subr.bf16.mxu0 %v1044
  %1368 = vmatpush1.bf16.msra.mxu0 %v1043
  %1369 = vmatprep.subr.bf16.mxu0 %v1048
  %1370 = vmatpush1.bf16.msra.mxu0 %v1047
  %1371 = vmatprep.subr.bf16.mxu0 %v1052
  %1372 = vmatpush1.bf16.msra.mxu0 %v1051
  %1373 = vmatprep.subr.bf16.mxu0 %v1056
  %1374 = vmatpush1.bf16.msra.mxu0 %v1055
  %1375 = vmatprep.subr.bf16.mxu0 %v1060
  %1376 = vmatpush1.bf16.msra.mxu0 %v1059
  %1377 = vmatprep.subr.bf16.mxu0 %v1064
  %1378 = vmatpush1.bf16.msra.mxu0 %v1063
  %1379 = vmatprep.subr.bf16.mxu0 %v1068
  %1380 = vmatpush1.bf16.msra.mxu0 %v1067
  %1381 = vmatprep.mubr.bf16.mxu0 %v296
  %1382 = vmatmul.mubr.bf16.gmra.mrb[0].mxu0 %v295
  %v1383 = vpop.f32.mrb[0].mxu0
  %v1384 = vadd.f32 %v1341, %v1383
  %v1385 = vpop.f32.mrb[0].mxu0
  %v1386 = vadd.f32 %v1343, %v1385
  %v1387 = vpop.f32.mrb[0].mxu0
  %v1388 = vadd.f32 %v1345, %v1387
  %v1389 = vpop.f32.mrb[0].mxu0
  %v1390 = vadd.f32 %v1347, %v1389
  %1391 = vdwg.mxu0
  %1392 = vmatprep.subr.bf16.mxu0 %v882
  %1393 = vmatpush1.bf16.msra.mxu0 %v881
  %1394 = vmatprep.subr.bf16.mxu0 %v886
  %1395 = vmatpush1.bf16.msra.mxu0 %v885
  %1396 = vmatprep.subr.bf16.mxu0 %v890
  %1397 = vmatpush1.bf16.msra.mxu0 %v889
  %1398 = vmatprep.subr.bf16.mxu0 %v894
  %1399 = vmatpush1.bf16.msra.mxu0 %v893
  %1400 = vmatprep.subr.bf16.mxu0 %v898
  %1401 = vmatpush1.bf16.msra.mxu0 %v897
  %1402 = vmatprep.subr.bf16.mxu0 %v902
  %1403 = vmatpush1.bf16.msra.mxu0 %v901
  %1404 = vmatprep.subr.bf16.mxu0 %v906
  %1405 = vmatpush1.bf16.msra.mxu0 %v905
  %1406 = vmatprep.subr.bf16.mxu0 %v910
  %1407 = vmatpush1.bf16.msra.mxu0 %v909
  %1408 = vmatprep.subr.bf16.mxu0 %v914
  %1409 = vmatpush1.bf16.msra.mxu0 %v913
  %1410 = vmatprep.subr.bf16.mxu0 %v918
  %1411 = vmatpush1.bf16.msra.mxu0 %v917
  %1412 = vmatprep.subr.bf16.mxu0 %v922
  %1413 = vmatpush1.bf16.msra.mxu0 %v921
  %1414 = vmatprep.subr.bf16.mxu0 %v926
  %1415 = vmatpush1.bf16.msra.mxu0 %v925
  %1416 = vmatprep.subr.bf16.mxu0 %v930
  %1417 = vmatpush1.bf16.msra.mxu0 %v929
  %1418 = vmatprep.subr.bf16.mxu0 %v934
  %1419 = vmatpush1.bf16.msra.mxu0 %v933
  %1420 = vmatprep.subr.bf16.mxu0 %v938
  %1421 = vmatpush1.bf16.msra.mxu0 %v937
  %1422 = vmatprep.subr.bf16.mxu0 %v942
  %1423 = vmatpush1.bf16.msra.mxu0 %v941
  %1424 = vmatprep.mubr.bf16.mxu0 %v292
  %1425 = vmatmul.mubr.bf16.gmra.mrb[0].mxu0 %v291
  %v1426 = vpop.f32.mrb[0].mxu0
  %v1427 = vadd.f32 %v264, %v1426
  %v1428 = vpop.f32.mrb[0].mxu0
  %v1429 = vadd.f32 %v268, %v1428
  %v1430 = vpop.f32.mrb[0].mxu0
  %v1431 = vadd.f32 %v264, %v1430
  %v1432 = vpop.f32.mrb[0].mxu0
  %v1433 = vadd.f32 %v268, %v1432
  %1434 = vdwg.mxu0
  %1435 = vmatprep.subr.bf16.mxu0 %v946
  %1436 = vmatpush1.bf16.msra.mxu0 %v945
  %1437 = vmatprep.subr.bf16.mxu0 %v950
  %1438 = vmatpush1.bf16.msra.mxu0 %v949
  %1439 = vmatprep.subr.bf16.mxu0 %v954
  %1440 = vmatpush1.bf16.msra.mxu0 %v953
  %1441 = vmatprep.subr.bf16.mxu0 %v958
  %1442 = vmatpush1.bf16.msra.mxu0 %v957
  %1443 = vmatprep.subr.bf16.mxu0 %v962
  %1444 = vmatpush1.bf16.msra.mxu0 %v961
  %1445 = vmatprep.subr.bf16.mxu0 %v966
  %1446 = vmatpush1.bf16.msra.mxu0 %v965
  %1447 = vmatprep.subr.bf16.mxu0 %v970
  %1448 = vmatpush1.bf16.msra.mxu0 %v969
  %1449 = vmatprep.subr.bf16.mxu0 %v974
  %1450 = vmatpush1.bf16.msra.mxu0 %v973
  %1451 = vmatprep.subr.bf16.mxu0 %v978
  %1452 = vmatpush1.bf16.msra.mxu0 %v977
  %1453 = vmatprep.subr.bf16.mxu0 %v982
  %1454 = vmatpush1.bf16.msra.mxu0 %v981
  %1455 = vmatprep.subr.bf16.mxu0 %v986
  %1456 = vmatpush1.bf16.msra.mxu0 %v985
  %1457 = vmatprep.subr.bf16.mxu0 %v990
  %1458 = vmatpush1.bf16.msra.mxu0 %v989
  %1459 = vmatprep.subr.bf16.mxu0 %v994
  %1460 = vmatpush1.bf16.msra.mxu0 %v993
  %1461 = vmatprep.subr.bf16.mxu0 %v998
  %1462 = vmatpush1.bf16.msra.mxu0 %v997
  %1463 = vmatprep.subr.bf16.mxu0 %v1002
  %1464 = vmatpush1.bf16.msra.mxu0 %v1001
  %1465 = vmatprep.subr.bf16.mxu0 %v1006
  %1466 = vmatpush1.bf16.msra.mxu0 %v1005
  %1467 = vmatprep.mubr.bf16.mxu0 %v294
  %1468 = vmatmul.mubr.bf16.gmra.mrb[0].mxu0 %v293
  %v1469 = vpop.f32.mrb[0].mxu0
  %v1470 = vadd.f32 %v1427, %v1469
  %v1471 = vpop.f32.mrb[0].mxu0
  %v1472 = vadd.f32 %v1429, %v1471
  %v1473 = vpop.f32.mrb[0].mxu0
  %v1474 = vadd.f32 %v1431, %v1473
  %v1475 = vpop.f32.mrb[0].mxu0
  %v1476 = vadd.f32 %v1433, %v1475
  %1477 = vdwg.mxu0
  %1478 = vmatprep.subr.bf16.mxu0 %v1010
  %1479 = vmatpush1.bf16.msra.mxu0 %v1009
  %1480 = vmatprep.subr.bf16.mxu0 %v1014
  %1481 = vmatpush1.bf16.msra.mxu0 %v1013
  %1482 = vmatprep.subr.bf16.mxu0 %v1018
  %1483 = vmatpush1.bf16.msra.mxu0 %v1017
  %1484 = vmatprep.subr.bf16.mxu0 %v1022
  %1485 = vmatpush1.bf16.msra.mxu0 %v1021
  %1486 = vmatprep.subr.bf16.mxu0 %v1026
  %1487 = vmatpush1.bf16.msra.mxu0 %v1025
  %1488 = vmatprep.subr.bf16.mxu0 %v1030
  %1489 = vmatpush1.bf16.msra.mxu0 %v1029
  %1490 = vmatprep.subr.bf16.mxu0 %v1034
  %1491 = vmatpush1.bf16.msra.mxu0 %v1033
  %1492 = vmatprep.subr.bf16.mxu0 %v1038
  %1493 = vmatpush1.bf16.msra.mxu0 %v1037
  %1494 = vmatprep.subr.bf16.mxu0 %v1042
  %1495 = vmatpush1.bf16.msra.mxu0 %v1041
  %1496 = vmatprep.subr.bf16.mxu0 %v1046
  %1497 = vmatpush1.bf16.msra.mxu0 %v1045
  %1498 = vmatprep.subr.bf16.mxu0 %v1050
  %1499 = vmatpush1.bf16.msra.mxu0 %v1049
  %1500 = vmatprep.subr.bf16.mxu0 %v1054
  %1501 = vmatpush1.bf16.msra.mxu0 %v1053
  %1502 = vmatprep.subr.bf16.mxu0 %v1058
  %1503 = vmatpush1.bf16.msra.mxu0 %v1057
  %1504 = vmatprep.subr.bf16.mxu0 %v1062
  %1505 = vmatpush1.bf16.msra.mxu0 %v1061
  %1506 = vmatprep.subr.bf16.mxu0 %v1066
  %1507 = vmatpush1.bf16.msra.mxu0 %v1065
  %1508 = vmatprep.subr.bf16.mxu0 %v1070
  %1509 = vmatpush1.bf16.msra.mxu0 %v1069
  %1510 = vmatprep.mubr.bf16.mxu0 %v296
  %1511 = vmatmul.mubr.bf16.gmra.mrb[0].mxu0 %v295
  %v1512 = vpop.f32.mrb[0].mxu0
  %v1513 = vadd.f32 %v1470, %v1512
  %v1514 = vpop.f32.mrb[0].mxu0
  %v1515 = vadd.f32 %v1472, %v1514
  %v1516 = vpop.f32.mrb[0].mxu0
  %v1517 = vadd.f32 %v1474, %v1516
  %v1518 = vpop.f32.mrb[0].mxu0
  %v1519 = vadd.f32 %v1476, %v1518
  %1520 = vdwg.mxu0
  %v1521 = vsub.f32 0.0, %v1384
  %v1522 = vsub.f32 0.0, %v1386
  %v1523 = vsub.f32 0.0, %v1513
  %v1524 = vsub.f32 0.0, %v1515
  %v1525 = vsub.f32 0.0, %v1388
  %v1526 = vsub.f32 0.0, %v1390
  %v1527 = vsub.f32 0.0, %v1517
  %v1528 = vsub.f32 0.0, %v1519
  %v1529 = vmul.f32 %v1521, 1.442695
  %v1530 = vpow.pop %v1529
  %v1531 = vmul.f32 %v1522, 1.442695
  %v1532 = vpow.pop %v1531
  %v1533 = vmul.f32 %v1523, 1.442695
  %v1534 = vpow.pop %v1533
  %v1535 = vmul.f32 %v1524, 1.442695
  %v1536 = vpow.pop %v1535
  %v1537 = vmul.f32 %v1525, 1.442695
  %v1538 = vpow.pop %v1537
  %v1539 = vmul.f32 %v1526, 1.442695
  %v1540 = vpow.pop %v1539
  %v1541 = vmul.f32 %v1527, 1.442695
  %v1542 = vpow.pop %v1541
  %v1543 = vmul.f32 %v1528, 1.442695
  %v1544 = vpow.pop %v1543
  %v1545 = vadd.f32 %v1530, 1.0
  %v1546 = vadd.f32 %v1532, 1.0
  %v1547 = vadd.f32 %v1534, 1.0
  %v1548 = vadd.f32 %v1536, 1.0
  %v1549 = vadd.f32 %v1538, 1.0
  %v1550 = vadd.f32 %v1540, 1.0
  %v1551 = vadd.f32 %v1542, 1.0
  %v1552 = vadd.f32 %v1544, 1.0
  %v1553 = vrcp.pop %v1545
  %v1554 = vmul.f32 %v1384, %v1553
  %v1555 = vrcp.pop %v1546
  %v1556 = vmul.f32 %v1386, %v1555
  %v1557 = vrcp.pop %v1547
  %v1558 = vmul.f32 %v1513, %v1557
  %v1559 = vrcp.pop %v1548
  %v1560 = vmul.f32 %v1515, %v1559
  %v1561 = vrcp.pop %v1549
  %v1562 = vmul.f32 %v1388, %v1561
  %v1563 = vrcp.pop %v1550
  %v1564 = vmul.f32 %v1390, %v1563
  %v1565 = vrcp.pop %v1551
  %v1566 = vmul.f32 %v1517, %v1565
  %v1567 = vrcp.pop %v1552
  %v1568 = vmul.f32 %v1519, %v1567
  %v1569 = vpack.c.bf16 %v1562, %v1554
  %v1570 = vpack.c.bf16 %v1564, %v1556
  %v1571 = vpack.c.bf16 %v1566, %v1558
  %v1572 = vpack.c.bf16 %v1568, %v1560
  %v1573 = vld [vmem:[%s3] sm:$0xff]
  %v1574 = vld [vmem:[%s3 + $0x8] sm:$0xff]
  %v1575 = vld [vmem:[%s3 + $0x10] sm:$0xff]
  %v1576 = vld [vmem:[%s3 + $0x18] sm:$0xff]
  %v1577 = vld [vmem:[%s3 + $0x20] sm:$0xff]
  %v1578 = vld [vmem:[%s3 + $0x28] sm:$0xff]
  %v1579 = vld [vmem:[%s3 + $0x30] sm:$0xff]
  %v1580 = vld [vmem:[%s3 + $0x38] sm:$0xff]
  %v1581 = vld [vmem:[%s3 + $0x40] sm:$0xff]
  %v1582 = vld [vmem:[%s3 + $0x48] sm:$0xff]
  %v1583 = vld [vmem:[%s3 + $0x50] sm:$0xff]
  %v1584 = vld [vmem:[%s3 + $0x58] sm:$0xff]
  %v1585 = vld [vmem:[%s3 + $0x60] sm:$0xff]
  %v1586 = vld [vmem:[%s3 + $0x68] sm:$0xff]
  %v1587 = vld [vmem:[%s3 + $0x70] sm:$0xff]
  %v1588 = vld [vmem:[%s3 + $0x78] sm:$0xff]
  %v1589 = vld [vmem:[%s3 + $0x80] sm:$0xff]
  %v1590 = vld [vmem:[%s3 + $0x88] sm:$0xff]
  %v1591 = vld [vmem:[%s3 + $0x90] sm:$0xff]
  %v1592 = vld [vmem:[%s3 + $0x98] sm:$0xff]
  %v1593 = vld [vmem:[%s3 + $0xa0] sm:$0xff]
  %v1594 = vld [vmem:[%s3 + $0xa8] sm:$0xff]
  %v1595 = vld [vmem:[%s3 + $0xb0] sm:$0xff]
  %v1596 = vld [vmem:[%s3 + $0xb8] sm:$0xff]
  %v1597 = vld [vmem:[%s3 + $0xc0] sm:$0xff]
  %v1598 = vld [vmem:[%s3 + $0xc8] sm:$0xff]
  %v1599 = vld [vmem:[%s3 + $0xd0] sm:$0xff]
  %v1600 = vld [vmem:[%s3 + $0xd8] sm:$0xff]
  %v1601 = vld [vmem:[%s3 + $0xe0] sm:$0xff]
  %v1602 = vld [vmem:[%s3 + $0xe8] sm:$0xff]
  %v1603 = vld [vmem:[%s3 + $0xf0] sm:$0xff]
  %v1604 = vld [vmem:[%s3 + $0xf8] sm:$0xff]
  %v1605 = vld [vmem:[%s3 + $0x100] sm:$0xff]
  %v1606 = vld [vmem:[%s3 + $0x108] sm:$0xff]
  %v1607 = vld [vmem:[%s3 + $0x110] sm:$0xff]
  %v1608 = vld [vmem:[%s3 + $0x118] sm:$0xff]
  %v1609 = vld [vmem:[%s3 + $0x120] sm:$0xff]
  %v1610 = vld [vmem:[%s3 + $0x128] sm:$0xff]
  %v1611 = vld [vmem:[%s3 + $0x130] sm:$0xff]
  %v1612 = vld [vmem:[%s3 + $0x138] sm:$0xff]
  %v1613 = vld [vmem:[%s3 + $0x140] sm:$0xff]
  %v1614 = vld [vmem:[%s3 + $0x148] sm:$0xff]
  %v1615 = vld [vmem:[%s3 + $0x150] sm:$0xff]
  %v1616 = vld [vmem:[%s3 + $0x158] sm:$0xff]
  %v1617 = vld [vmem:[%s3 + $0x160] sm:$0xff]
  %v1618 = vld [vmem:[%s3 + $0x168] sm:$0xff]
  %v1619 = vld [vmem:[%s3 + $0x170] sm:$0xff]
  %v1620 = vld [vmem:[%s3 + $0x178] sm:$0xff]
  %v1621 = vld [vmem:[%s3 + $0x180] sm:$0xff]
  %v1622 = vld [vmem:[%s3 + $0x188] sm:$0xff]
  %v1623 = vld [vmem:[%s3 + $0x190] sm:$0xff]
  %v1624 = vld [vmem:[%s3 + $0x198] sm:$0xff]
  %v1625 = vld [vmem:[%s3 + $0x1a0] sm:$0xff]
  %v1626 = vld [vmem:[%s3 + $0x1a8] sm:$0xff]
  %v1627 = vld [vmem:[%s3 + $0x1b0] sm:$0xff]
  %v1628 = vld [vmem:[%s3 + $0x1b8] sm:$0xff]
  %v1629 = vld [vmem:[%s3 + $0x1c0] sm:$0xff]
  %v1630 = vld [vmem:[%s3 + $0x1c8] sm:$0xff]
  %v1631 = vld [vmem:[%s3 + $0x1d0] sm:$0xff]
  %v1632 = vld [vmem:[%s3 + $0x1d8] sm:$0xff]
  %v1633 = vld [vmem:[%s3 + $0x1e0] sm:$0xff]
  %v1634 = vld [vmem:[%s3 + $0x1e8] sm:$0xff]
  %v1635 = vld [vmem:[%s3 + $0x1f0] sm:$0xff]
  %v1636 = vld [vmem:[%s3 + $0x1f8] sm:$0xff]
  %v1637 = vld [vmem:[%s4] sm:$0x3]
  %v1639 = vlaneseq
  %v1640 = vshrl.u32 %v1639, 7
  %v1641 = vsub.s32 0, %v1640
  %v1642 = vrot.slane %v1637, %v1641
  %v1643 = vlaneseq
  %v1644 = vshrl.u32 %v1643, 7
  %v1645 = vsub.s32 1, %v1644
  %v1646 = vrot.slane %v1637, %v1645
  %v1713 = vunpack.c.l.b16 %v1573
  %v1714 = vunpack.c.h.b16 %v1573
  %v1715 = vunpack.c.l.b16 %v1574
  %v1716 = vunpack.c.h.b16 %v1574
  %v1717 = vunpack.c.l.b16 %v1575
  %v1718 = vunpack.c.h.b16 %v1575
  %v1719 = vunpack.c.l.b16 %v1576
  %v1720 = vunpack.c.h.b16 %v1576
  %v1721 = vunpack.c.l.b16 %v1577
  %v1722 = vunpack.c.h.b16 %v1577
  %v1723 = vunpack.c.l.b16 %v1578
  %v1724 = vunpack.c.h.b16 %v1578
  %v1725 = vunpack.c.l.b16 %v1579
  %v1726 = vunpack.c.h.b16 %v1579
  %v1727 = vunpack.c.l.b16 %v1580
  %v1728 = vunpack.c.h.b16 %v1580
  %v1729 = vunpack.c.l.b16 %v1581
  %v1730 = vunpack.c.h.b16 %v1581
  %v1731 = vunpack.c.l.b16 %v1582
  %v1732 = vunpack.c.h.b16 %v1582
  %v1733 = vunpack.c.l.b16 %v1583
  %v1734 = vunpack.c.h.b16 %v1583
  %v1735 = vunpack.c.l.b16 %v1584
  %v1736 = vunpack.c.h.b16 %v1584
  %v1737 = vunpack.c.l.b16 %v1585
  %v1738 = vunpack.c.h.b16 %v1585
  %v1739 = vunpack.c.l.b16 %v1586
  %v1740 = vunpack.c.h.b16 %v1586
  %v1741 = vunpack.c.l.b16 %v1587
  %v1742 = vunpack.c.h.b16 %v1587
  %v1743 = vunpack.c.l.b16 %v1588
  %v1744 = vunpack.c.h.b16 %v1588
  %v1745 = vunpack.c.l.b16 %v1589
  %v1746 = vunpack.c.h.b16 %v1589
  %v1747 = vunpack.c.l.b16 %v1590
  %v1748 = vunpack.c.h.b16 %v1590
  %v1749 = vunpack.c.l.b16 %v1591
  %v1750 = vunpack.c.h.b16 %v1591
  %v1751 = vunpack.c.l.b16 %v1592
  %v1752 = vunpack.c.h.b16 %v1592
  %v1753 = vunpack.c.l.b16 %v1593
  %v1754 = vunpack.c.h.b16 %v1593
  %v1755 = vunpack.c.l.b16 %v1594
  %v1756 = vunpack.c.h.b16 %v1594
  %v1757 = vunpack.c.l.b16 %v1595
  %v1758 = vunpack.c.h.b16 %v1595
  %v1759 = vunpack.c.l.b16 %v1596
  %v1760 = vunpack.c.h.b16 %v1596
  %v1761 = vunpack.c.l.b16 %v1597
  %v1762 = vunpack.c.h.b16 %v1597
  %v1763 = vunpack.c.l.b16 %v1598
  %v1764 = vunpack.c.h.b16 %v1598
  %v1765 = vunpack.c.l.b16 %v1599
  %v1766 = vunpack.c.h.b16 %v1599
  %v1767 = vunpack.c.l.b16 %v1600
  %v1768 = vunpack.c.h.b16 %v1600
  %v1769 = vunpack.c.l.b16 %v1601
  %v1770 = vunpack.c.h.b16 %v1601
  %v1771 = vunpack.c.l.b16 %v1602
  %v1772 = vunpack.c.h.b16 %v1602
  %v1773 = vunpack.c.l.b16 %v1603
  %v1774 = vunpack.c.h.b16 %v1603
  %v1775 = vunpack.c.l.b16 %v1604
  %v1776 = vunpack.c.h.b16 %v1604
  %v1777 = vunpack.c.l.b16 %v1605
  %v1778 = vunpack.c.h.b16 %v1605
  %v1779 = vunpack.c.l.b16 %v1606
  %v1780 = vunpack.c.h.b16 %v1606
  %v1781 = vunpack.c.l.b16 %v1607
  %v1782 = vunpack.c.h.b16 %v1607
  %v1783 = vunpack.c.l.b16 %v1608
  %v1784 = vunpack.c.h.b16 %v1608
  %v1785 = vunpack.c.l.b16 %v1609
  %v1786 = vunpack.c.h.b16 %v1609
  %v1787 = vunpack.c.l.b16 %v1610
  %v1788 = vunpack.c.h.b16 %v1610
  %v1789 = vunpack.c.l.b16 %v1611
  %v1790 = vunpack.c.h.b16 %v1611
  %v1791 = vunpack.c.l.b16 %v1612
  %v1792 = vunpack.c.h.b16 %v1612
  %v1793 = vunpack.c.l.b16 %v1613
  %v1794 = vunpack.c.h.b16 %v1613
  %v1795 = vunpack.c.l.b16 %v1614
  %v1796 = vunpack.c.h.b16 %v1614
  %v1797 = vunpack.c.l.b16 %v1615
  %v1798 = vunpack.c.h.b16 %v1615
  %v1799 = vunpack.c.l.b16 %v1616
  %v1800 = vunpack.c.h.b16 %v1616
  %v1801 = vunpack.c.l.b16 %v1617
  %v1802 = vunpack.c.h.b16 %v1617
  %v1803 = vunpack.c.l.b16 %v1618
  %v1804 = vunpack.c.h.b16 %v1618
  %v1805 = vunpack.c.l.b16 %v1619
  %v1806 = vunpack.c.h.b16 %v1619
  %v1807 = vunpack.c.l.b16 %v1620
  %v1808 = vunpack.c.h.b16 %v1620
  %v1809 = vunpack.c.l.b16 %v1621
  %v1810 = vunpack.c.h.b16 %v1621
  %v1811 = vunpack.c.l.b16 %v1622
  %v1812 = vunpack.c.h.b16 %v1622
  %v1813 = vunpack.c.l.b16 %v1623
  %v1814 = vunpack.c.h.b16 %v1623
  %v1815 = vunpack.c.l.b16 %v1624
  %v1816 = vunpack.c.h.b16 %v1624
  %v1817 = vunpack.c.l.b16 %v1625
  %v1818 = vunpack.c.h.b16 %v1625
  %v1819 = vunpack.c.l.b16 %v1626
  %v1820 = vunpack.c.h.b16 %v1626
  %v1821 = vunpack.c.l.b16 %v1627
  %v1822 = vunpack.c.h.b16 %v1627
  %v1823 = vunpack.c.l.b16 %v1628
  %v1824 = vunpack.c.h.b16 %v1628
  %v1825 = vunpack.c.l.b16 %v1629
  %v1826 = vunpack.c.h.b16 %v1629
  %v1827 = vunpack.c.l.b16 %v1630
  %v1828 = vunpack.c.h.b16 %v1630
  %v1829 = vunpack.c.l.b16 %v1631
  %v1830 = vunpack.c.h.b16 %v1631
  %v1831 = vunpack.c.l.b16 %v1632
  %v1832 = vunpack.c.h.b16 %v1632
  %v1833 = vunpack.c.l.b16 %v1633
  %v1834 = vunpack.c.h.b16 %v1633
  %v1835 = vunpack.c.l.b16 %v1634
  %v1836 = vunpack.c.h.b16 %v1634
  %v1837 = vunpack.c.l.b16 %v1635
  %v1838 = vunpack.c.h.b16 %v1635
  %v1839 = vunpack.c.l.b16 %v1636
  %v1840 = vunpack.c.h.b16 %v1636
  %v1841 = vpack.c.b16 %v1715, %v1713
  %v1842 = vpack.c.b16 %v1716, %v1714
  %v1843 = vpack.c.b16 %v1719, %v1717
  %v1844 = vpack.c.b16 %v1720, %v1718
  %v1845 = vpack.c.b16 %v1723, %v1721
  %v1846 = vpack.c.b16 %v1724, %v1722
  %v1847 = vpack.c.b16 %v1727, %v1725
  %v1848 = vpack.c.b16 %v1728, %v1726
  %v1849 = vpack.c.b16 %v1731, %v1729
  %v1850 = vpack.c.b16 %v1732, %v1730
  %v1851 = vpack.c.b16 %v1735, %v1733
  %v1852 = vpack.c.b16 %v1736, %v1734
  %v1853 = vpack.c.b16 %v1739, %v1737
  %v1854 = vpack.c.b16 %v1740, %v1738
  %v1855 = vpack.c.b16 %v1743, %v1741
  %v1856 = vpack.c.b16 %v1744, %v1742
  %v1857 = vpack.c.b16 %v1747, %v1745
  %v1858 = vpack.c.b16 %v1748, %v1746
  %v1859 = vpack.c.b16 %v1751, %v1749
  %v1860 = vpack.c.b16 %v1752, %v1750
  %v1861 = vpack.c.b16 %v1755, %v1753
  %v1862 = vpack.c.b16 %v1756, %v1754
  %v1863 = vpack.c.b16 %v1759, %v1757
  %v1864 = vpack.c.b16 %v1760, %v1758
  %v1865 = vpack.c.b16 %v1763, %v1761
  %v1866 = vpack.c.b16 %v1764, %v1762
  %v1867 = vpack.c.b16 %v1767, %v1765
  %v1868 = vpack.c.b16 %v1768, %v1766
  %v1869 = vpack.c.b16 %v1771, %v1769
  %v1870 = vpack.c.b16 %v1772, %v1770
  %v1871 = vpack.c.b16 %v1775, %v1773
  %v1872 = vpack.c.b16 %v1776, %v1774
  %v1873 = vpack.c.b16 %v1779, %v1777
  %v1874 = vpack.c.b16 %v1780, %v1778
  %v1875 = vpack.c.b16 %v1783, %v1781
  %v1876 = vpack.c.b16 %v1784, %v1782
  %v1877 = vpack.c.b16 %v1787, %v1785
  %v1878 = vpack.c.b16 %v1788, %v1786
  %v1879 = vpack.c.b16 %v1791, %v1789
  %v1880 = vpack.c.b16 %v1792, %v1790
  %v1881 = vpack.c.b16 %v1795, %v1793
  %v1882 = vpack.c.b16 %v1796, %v1794
  %v1883 = vpack.c.b16 %v1799, %v1797
  %v1884 = vpack.c.b16 %v1800, %v1798
  %v1885 = vpack.c.b16 %v1803, %v1801
  %v1886 = vpack.c.b16 %v1804, %v1802
  %v1887 = vpack.c.b16 %v1807, %v1805
  %v1888 = vpack.c.b16 %v1808, %v1806
  %v1889 = vpack.c.b16 %v1811, %v1809
  %v1890 = vpack.c.b16 %v1812, %v1810
  %v1891 = vpack.c.b16 %v1815, %v1813
  %v1892 = vpack.c.b16 %v1816, %v1814
  %v1893 = vpack.c.b16 %v1819, %v1817
  %v1894 = vpack.c.b16 %v1820, %v1818
  %v1895 = vpack.c.b16 %v1823, %v1821
  %v1896 = vpack.c.b16 %v1824, %v1822
  %v1897 = vpack.c.b16 %v1827, %v1825
  %v1898 = vpack.c.b16 %v1828, %v1826
  %v1899 = vpack.c.b16 %v1831, %v1829
  %v1900 = vpack.c.b16 %v1832, %v1830
  %v1901 = vpack.c.b16 %v1835, %v1833
  %v1902 = vpack.c.b16 %v1836, %v1834
  %v1903 = vpack.c.b16 %v1839, %v1837
  %v1904 = vpack.c.b16 %v1840, %v1838
  %1969 = vmatprep.subr.bf16.mxu0 %v1842
  %1970 = vmatpush1.bf16.msra.mxu0 %v1841
  %1971 = vmatprep.subr.bf16.mxu0 %v1844
  %1972 = vmatpush1.bf16.msra.mxu0 %v1843
  %1973 = vmatprep.subr.bf16.mxu0 %v1846
  %1974 = vmatpush1.bf16.msra.mxu0 %v1845
  %1975 = vmatprep.subr.bf16.mxu0 %v1848
  %1976 = vmatpush1.bf16.msra.mxu0 %v1847
  %1977 = vmatprep.subr.bf16.mxu0 %v1850
  %1978 = vmatpush1.bf16.msra.mxu0 %v1849
  %1979 = vmatprep.subr.bf16.mxu0 %v1852
  %1980 = vmatpush1.bf16.msra.mxu0 %v1851
  %1981 = vmatprep.subr.bf16.mxu0 %v1854
  %1982 = vmatpush1.bf16.msra.mxu0 %v1853
  %1983 = vmatprep.subr.bf16.mxu0 %v1856
  %1984 = vmatpush1.bf16.msra.mxu0 %v1855
  %1985 = vmatprep.subr.bf16.mxu0 %v1858
  %1986 = vmatpush1.bf16.msra.mxu0 %v1857
  %1987 = vmatprep.subr.bf16.mxu0 %v1860
  %1988 = vmatpush1.bf16.msra.mxu0 %v1859
  %1989 = vmatprep.subr.bf16.mxu0 %v1862
  %1990 = vmatpush1.bf16.msra.mxu0 %v1861
  %1991 = vmatprep.subr.bf16.mxu0 %v1864
  %1992 = vmatpush1.bf16.msra.mxu0 %v1863
  %1993 = vmatprep.subr.bf16.mxu0 %v1866
  %1994 = vmatpush1.bf16.msra.mxu0 %v1865
  %1995 = vmatprep.subr.bf16.mxu0 %v1868
  %1996 = vmatpush1.bf16.msra.mxu0 %v1867
  %1997 = vmatprep.subr.bf16.mxu0 %v1870
  %1998 = vmatpush1.bf16.msra.mxu0 %v1869
  %1999 = vmatprep.subr.bf16.mxu0 %v1872
  %2000 = vmatpush1.bf16.msra.mxu0 %v1871
  %2001 = vmatprep.mubr.bf16.mxu0 %v1570
  %2002 = vmatmul.mubr.bf16.gmra.mrb[0].mxu0 %v1569
  %v2003 = vpop.f32.mrb[0].mxu0
  %v2004 = vadd.f32 %v1642, %v2003
  %v2005 = vpop.f32.mrb[0].mxu0
  %v2006 = vadd.f32 %v1646, %v2005
  %v2007 = vpop.f32.mrb[0].mxu0
  %v2008 = vadd.f32 %v1642, %v2007
  %v2009 = vpop.f32.mrb[0].mxu0
  %v2010 = vadd.f32 %v1646, %v2009
  %2011 = vdwg.mxu0
  %2012 = vmatprep.subr.bf16.mxu0 %v1874
  %2013 = vmatpush1.bf16.msra.mxu0 %v1873
  %2014 = vmatprep.subr.bf16.mxu0 %v1876
  %2015 = vmatpush1.bf16.msra.mxu0 %v1875
  %2016 = vmatprep.subr.bf16.mxu0 %v1878
  %2017 = vmatpush1.bf16.msra.mxu0 %v1877
  %2018 = vmatprep.subr.bf16.mxu0 %v1880
  %2019 = vmatpush1.bf16.msra.mxu0 %v1879
  %2020 = vmatprep.subr.bf16.mxu0 %v1882
  %2021 = vmatpush1.bf16.msra.mxu0 %v1881
  %2022 = vmatprep.subr.bf16.mxu0 %v1884
  %2023 = vmatpush1.bf16.msra.mxu0 %v1883
  %2024 = vmatprep.subr.bf16.mxu0 %v1886
  %2025 = vmatpush1.bf16.msra.mxu0 %v1885
  %2026 = vmatprep.subr.bf16.mxu0 %v1888
  %2027 = vmatpush1.bf16.msra.mxu0 %v1887
  %2028 = vmatprep.subr.bf16.mxu0 %v1890
  %2029 = vmatpush1.bf16.msra.mxu0 %v1889
  %2030 = vmatprep.subr.bf16.mxu0 %v1892
  %2031 = vmatpush1.bf16.msra.mxu0 %v1891
  %2032 = vmatprep.subr.bf16.mxu0 %v1894
  %2033 = vmatpush1.bf16.msra.mxu0 %v1893
  %2034 = vmatprep.subr.bf16.mxu0 %v1896
  %2035 = vmatpush1.bf16.msra.mxu0 %v1895
  %2036 = vmatprep.subr.bf16.mxu0 %v1898
  %2037 = vmatpush1.bf16.msra.mxu0 %v1897
  %2038 = vmatprep.subr.bf16.mxu0 %v1900
  %2039 = vmatpush1.bf16.msra.mxu0 %v1899
  %2040 = vmatprep.subr.bf16.mxu0 %v1902
  %2041 = vmatpush1.bf16.msra.mxu0 %v1901
  %2042 = vmatprep.subr.bf16.mxu0 %v1904
  %2043 = vmatpush1.bf16.msra.mxu0 %v1903
  %2044 = vmatprep.mubr.bf16.mxu0 %v1572
  %2045 = vmatmul.mubr.bf16.gmra.mrb[0].mxu0 %v1571
  %v2046 = vpop.f32.mrb[0].mxu0
  %v2047 = vadd.f32 %v2004, %v2046
  %v2048 = vpop.f32.mrb[0].mxu0
  %v2049 = vadd.f32 %v2006, %v2048
  %v2050 = vpop.f32.mrb[0].mxu0
  %v2051 = vadd.f32 %v2008, %v2050
  %v2052 = vpop.f32.mrb[0].mxu0
  %v2053 = vadd.f32 %v2010, %v2052
  %2054 = vdwg.mxu0
  %v2055 = vsub.f32 0.0, %v2047
  %v2056 = vsub.f32 0.0, %v2049
  %v2057 = vsub.f32 0.0, %v2051
  %v2058 = vsub.f32 0.0, %v2053
  %v2059 = vmul.f32 %v2055, 1.442695
  %v2060 = vpow.pop %v2059
  %v2061 = vmul.f32 %v2056, 1.442695
  %v2062 = vpow.pop %v2061
  %v2063 = vmul.f32 %v2057, 1.442695
  %v2064 = vpow.pop %v2063
  %v2065 = vmul.f32 %v2058, 1.442695
  %v2066 = vpow.pop %v2065
  %v2067 = vadd.f32 %v2060, 1.0
  %v2068 = vadd.f32 %v2062, 1.0
  %v2069 = vadd.f32 %v2064, 1.0
  %v2070 = vadd.f32 %v2066, 1.0
  %v2071 = vrcp.pop %v2067
  %v2072 = vmul.f32 %v2047, %v2071
  %v2073 = vrcp.pop %v2068
  %v2074 = vmul.f32 %v2049, %v2073
  %v2075 = vrcp.pop %v2069
  %v2076 = vmul.f32 %v2051, %v2075
  %v2077 = vrcp.pop %v2070
  %v2078 = vmul.f32 %v2053, %v2077
  %v2079 = vpack.c.bf16 %v2076, %v2072
  %v2080 = vpack.c.bf16 %v2078, %v2074
  %v2081 = vld [vmem:[%s5] sm:$0xff]
  %v2082 = vld [vmem:[%s5 + $0x8] sm:$0xff]
  %v2083 = vld [vmem:[%s5 + $0x10] sm:$0xff]
  %v2084 = vld [vmem:[%s5 + $0x18] sm:$0xff]
  %v2085 = vld [vmem:[%s5 + $0x20] sm:$0xff]
  %v2086 = vld [vmem:[%s5 + $0x28] sm:$0xff]
  %v2087 = vld [vmem:[%s5 + $0x30] sm:$0xff]
  %v2088 = vld [vmem:[%s5 + $0x38] sm:$0xff]
  %v2089 = vld [vmem:[%s5 + $0x40] sm:$0xff]
  %v2090 = vld [vmem:[%s5 + $0x48] sm:$0xff]
  %v2091 = vld [vmem:[%s5 + $0x50] sm:$0xff]
  %v2092 = vld [vmem:[%s5 + $0x58] sm:$0xff]
  %v2093 = vld [vmem:[%s5 + $0x60] sm:$0xff]
  %v2094 = vld [vmem:[%s5 + $0x68] sm:$0xff]
  %v2095 = vld [vmem:[%s5 + $0x70] sm:$0xff]
  %v2096 = vld [vmem:[%s5 + $0x78] sm:$0xff]
  %v2097 = vld [vmem:[%s5 + $0x80] sm:$0xff]
  %v2098 = vld [vmem:[%s5 + $0x88] sm:$0xff]
  %v2099 = vld [vmem:[%s5 + $0x90] sm:$0xff]
  %v2100 = vld [vmem:[%s5 + $0x98] sm:$0xff]
  %v2101 = vld [vmem:[%s5 + $0xa0] sm:$0xff]
  %v2102 = vld [vmem:[%s5 + $0xa8] sm:$0xff]
  %v2103 = vld [vmem:[%s5 + $0xb0] sm:$0xff]
  %v2104 = vld [vmem:[%s5 + $0xb8] sm:$0xff]
  %v2105 = vld [vmem:[%s5 + $0xc0] sm:$0xff]
  %v2106 = vld [vmem:[%s5 + $0xc8] sm:$0xff]
  %v2107 = vld [vmem:[%s5 + $0xd0] sm:$0xff]
  %v2108 = vld [vmem:[%s5 + $0xd8] sm:$0xff]
  %v2109 = vld [vmem:[%s5 + $0xe0] sm:$0xff]
  %v2110 = vld [vmem:[%s5 + $0xe8] sm:$0xff]
  %v2111 = vld [vmem:[%s5 + $0xf0] sm:$0xff]
  %v2112 = vld [vmem:[%s5 + $0xf8] sm:$0xff]
  %v2113 = vld [vmem:[%s6] sm:$0x3]
  %v2115 = vlaneseq
  %v2116 = vshrl.u32 %v2115, 7
  %v2117 = vsub.s32 0, %v2116
  %v2118 = vrot.slane %v2113, %v2117
  %v2119 = vlaneseq
  %v2120 = vshrl.u32 %v2119, 7
  %v2121 = vsub.s32 1, %v2120
  %v2122 = vrot.slane %v2113, %v2121
  %v2157 = vunpack.c.l.b16 %v2081
  %v2158 = vunpack.c.h.b16 %v2081
  %v2159 = vunpack.c.l.b16 %v2082
  %v2160 = vunpack.c.h.b16 %v2082
  %v2161 = vunpack.c.l.b16 %v2083
  %v2162 = vunpack.c.h.b16 %v2083
  %v2163 = vunpack.c.l.b16 %v2084
  %v2164 = vunpack.c.h.b16 %v2084
  %v2165 = vunpack.c.l.b16 %v2085
  %v2166 = vunpack.c.h.b16 %v2085
  %v2167 = vunpack.c.l.b16 %v2086
  %v2168 = vunpack.c.h.b16 %v2086
  %v2169 = vunpack.c.l.b16 %v2087
  %v2170 = vunpack.c.h.b16 %v2087
  %v2171 = vunpack.c.l.b16 %v2088
  %v2172 = vunpack.c.h.b16 %v2088
  %v2173 = vunpack.c.l.b16 %v2089
  %v2174 = vunpack.c.h.b16 %v2089
  %v2175 = vunpack.c.l.b16 %v2090
  %v2176 = vunpack.c.h.b16 %v2090
  %v2177 = vunpack.c.l.b16 %v2091
  %v2178 = vunpack.c.h.b16 %v2091
  %v2179 = vunpack.c.l.b16 %v2092
  %v2180 = vunpack.c.h.b16 %v2092
  %v2181 = vunpack.c.l.b16 %v2093
  %v2182 = vunpack.c.h.b16 %v2093
  %v2183 = vunpack.c.l.b16 %v2094
  %v2184 = vunpack.c.h.b16 %v2094
  %v2185 = vunpack.c.l.b16 %v2095
  %v2186 = vunpack.c.h.b16 %v2095
  %v2187 = vunpack.c.l.b16 %v2096
  %v2188 = vunpack.c.h.b16 %v2096
  %v2189 = vunpack.c.l.b16 %v2097
  %v2190 = vunpack.c.h.b16 %v2097
  %v2191 = vunpack.c.l.b16 %v2098
  %v2192 = vunpack.c.h.b16 %v2098
  %v2193 = vunpack.c.l.b16 %v2099
  %v2194 = vunpack.c.h.b16 %v2099
  %v2195 = vunpack.c.l.b16 %v2100
  %v2196 = vunpack.c.h.b16 %v2100
  %v2197 = vunpack.c.l.b16 %v2101
  %v2198 = vunpack.c.h.b16 %v2101
  %v2199 = vunpack.c.l.b16 %v2102
  %v2200 = vunpack.c.h.b16 %v2102
  %v2201 = vunpack.c.l.b16 %v2103
  %v2202 = vunpack.c.h.b16 %v2103
  %v2203 = vunpack.c.l.b16 %v2104
  %v2204 = vunpack.c.h.b16 %v2104
  %v2205 = vunpack.c.l.b16 %v2105
  %v2206 = vunpack.c.h.b16 %v2105
  %v2207 = vunpack.c.l.b16 %v2106
  %v2208 = vunpack.c.h.b16 %v2106
  %v2209 = vunpack.c.l.b16 %v2107
  %v2210 = vunpack.c.h.b16 %v2107
  %v2211 = vunpack.c.l.b16 %v2108
  %v2212 = vunpack.c.h.b16 %v2108
  %v2213 = vunpack.c.l.b16 %v2109
  %v2214 = vunpack.c.h.b16 %v2109
  %v2215 = vunpack.c.l.b16 %v2110
  %v2216 = vunpack.c.h.b16 %v2110
  %v2217 = vunpack.c.l.b16 %v2111
  %v2218 = vunpack.c.h.b16 %v2111
  %v2219 = vunpack.c.l.b16 %v2112
  %v2220 = vunpack.c.h.b16 %v2112
  %v2221 = vpack.c.b16 %v2159, %v2157
  %v2222 = vpack.c.b16 %v2160, %v2158
  %v2223 = vpack.c.b16 %v2163, %v2161
  %v2224 = vpack.c.b16 %v2164, %v2162
  %v2225 = vpack.c.b16 %v2167, %v2165
  %v2226 = vpack.c.b16 %v2168, %v2166
  %v2227 = vpack.c.b16 %v2171, %v2169
  %v2228 = vpack.c.b16 %v2172, %v2170
  %v2229 = vpack.c.b16 %v2175, %v2173
  %v2230 = vpack.c.b16 %v2176, %v2174
  %v2231 = vpack.c.b16 %v2179, %v2177
  %v2232 = vpack.c.b16 %v2180, %v2178
  %v2233 = vpack.c.b16 %v2183, %v2181
  %v2234 = vpack.c.b16 %v2184, %v2182
  %v2235 = vpack.c.b16 %v2187, %v2185
  %v2236 = vpack.c.b16 %v2188, %v2186
  %v2237 = vpack.c.b16 %v2191, %v2189
  %v2238 = vpack.c.b16 %v2192, %v2190
  %v2239 = vpack.c.b16 %v2195, %v2193
  %v2240 = vpack.c.b16 %v2196, %v2194
  %v2241 = vpack.c.b16 %v2199, %v2197
  %v2242 = vpack.c.b16 %v2200, %v2198
  %v2243 = vpack.c.b16 %v2203, %v2201
  %v2244 = vpack.c.b16 %v2204, %v2202
  %v2245 = vpack.c.b16 %v2207, %v2205
  %v2246 = vpack.c.b16 %v2208, %v2206
  %v2247 = vpack.c.b16 %v2211, %v2209
  %v2248 = vpack.c.b16 %v2212, %v2210
  %v2249 = vpack.c.b16 %v2215, %v2213
  %v2250 = vpack.c.b16 %v2216, %v2214
  %v2251 = vpack.c.b16 %v2219, %v2217
  %v2252 = vpack.c.b16 %v2220, %v2218
  %2285 = vmatprep.subr.bf16.mxu0 %v2222
  %2286 = vmatpush1.bf16.msra.mxu0 %v2221
  %2287 = vmatprep.subr.bf16.mxu0 %v2224
  %2288 = vmatpush1.bf16.msra.mxu0 %v2223
  %2289 = vmatprep.subr.bf16.mxu0 %v2226
  %2290 = vmatpush1.bf16.msra.mxu0 %v2225
  %2291 = vmatprep.subr.bf16.mxu0 %v2228
  %2292 = vmatpush1.bf16.msra.mxu0 %v2227
  %2293 = vmatprep.subr.bf16.mxu0 %v2230
  %2294 = vmatpush1.bf16.msra.mxu0 %v2229
  %2295 = vmatprep.subr.bf16.mxu0 %v2232
  %2296 = vmatpush1.bf16.msra.mxu0 %v2231
  %2297 = vmatprep.subr.bf16.mxu0 %v2234
  %2298 = vmatpush1.bf16.msra.mxu0 %v2233
  %2299 = vmatprep.subr.bf16.mxu0 %v2236
  %2300 = vmatpush1.bf16.msra.mxu0 %v2235
  %2301 = vmatprep.subr.bf16.mxu0 %v2238
  %2302 = vmatpush1.bf16.msra.mxu0 %v2237
  %2303 = vmatprep.subr.bf16.mxu0 %v2240
  %2304 = vmatpush1.bf16.msra.mxu0 %v2239
  %2305 = vmatprep.subr.bf16.mxu0 %v2242
  %2306 = vmatpush1.bf16.msra.mxu0 %v2241
  %2307 = vmatprep.subr.bf16.mxu0 %v2244
  %2308 = vmatpush1.bf16.msra.mxu0 %v2243
  %2309 = vmatprep.subr.bf16.mxu0 %v2246
  %2310 = vmatpush1.bf16.msra.mxu0 %v2245
  %2311 = vmatprep.subr.bf16.mxu0 %v2248
  %2312 = vmatpush1.bf16.msra.mxu0 %v2247
  %2313 = vmatprep.subr.bf16.mxu0 %v2250
  %2314 = vmatpush1.bf16.msra.mxu0 %v2249
  %2315 = vmatprep.subr.bf16.mxu0 %v2252
  %2316 = vmatpush1.bf16.msra.mxu0 %v2251
  %2317 = vmatprep.mubr.bf16.mxu0 %v2080
  %2318 = vmatmul.mubr.bf16.gmra.mrb[0].mxu0 %v2079
  %v2319 = vpop.f32.mrb[0].mxu0
  %v2320 = vadd.f32 %v2118, %v2319
  %v2321 = vpop.f32.mrb[0].mxu0
  %v2322 = vadd.f32 %v2122, %v2321
  %v2323 = vpop.f32.mrb[0].mxu0
  %v2324 = vadd.f32 %v2118, %v2323
  %v2325 = vpop.f32.mrb[0].mxu0
  %v2326 = vadd.f32 %v2122, %v2325
  %2327 = vdwg.mxu0
  %v2328 = vsub.f32 0.0, %v2320
  %v2329 = vsub.f32 0.0, %v2322
  %v2330 = vsub.f32 0.0, %v2324
  %v2331 = vsub.f32 0.0, %v2326
  %v2332 = vmul.f32 %v2328, 1.442695
  %v2333 = vpow.pop %v2332
  %v2334 = vmul.f32 %v2329, 1.442695
  %v2335 = vpow.pop %v2334
  %v2336 = vmul.f32 %v2330, 1.442695
  %v2337 = vpow.pop %v2336
  %v2338 = vmul.f32 %v2331, 1.442695
  %v2339 = vpow.pop %v2338
  %v2340 = vadd.f32 %v2333, 1.0
  %v2341 = vadd.f32 %v2335, 1.0
  %v2342 = vadd.f32 %v2337, 1.0
  %v2343 = vadd.f32 %v2339, 1.0
  %v2344 = vrcp.pop %v2340
  %v2345 = vmul.f32 %v2320, %v2344
  %v2346 = vrcp.pop %v2341
  %v2347 = vmul.f32 %v2322, %v2346
  %v2348 = vrcp.pop %v2342
  %v2349 = vmul.f32 %v2324, %v2348
  %v2350 = vrcp.pop %v2343
  %v2351 = vmul.f32 %v2326, %v2350
  %v2352 = vpack.c.bf16 %v2349, %v2345
  %v2353 = vpack.c.bf16 %v2351, %v2347
  %v2354 = vld [vmem:[%s7] sm:$0xff]
  %v2355 = vld [vmem:[%s7 + $0x8] sm:$0xff]
  %v2356 = vld [vmem:[%s7 + $0x10] sm:$0xff]
  %v2357 = vld [vmem:[%s7 + $0x18] sm:$0xff]
  %v2358 = vld [vmem:[%s7 + $0x20] sm:$0xff]
  %v2359 = vld [vmem:[%s7 + $0x28] sm:$0xff]
  %v2360 = vld [vmem:[%s7 + $0x30] sm:$0xff]
  %v2361 = vld [vmem:[%s7 + $0x38] sm:$0xff]
  %v2362 = vld [vmem:[%s7 + $0x40] sm:$0xff]
  %v2363 = vld [vmem:[%s7 + $0x48] sm:$0xff]
  %v2364 = vld [vmem:[%s7 + $0x50] sm:$0xff]
  %v2365 = vld [vmem:[%s7 + $0x58] sm:$0xff]
  %v2366 = vld [vmem:[%s7 + $0x60] sm:$0xff]
  %v2367 = vld [vmem:[%s7 + $0x68] sm:$0xff]
  %v2368 = vld [vmem:[%s7 + $0x70] sm:$0xff]
  %v2369 = vld [vmem:[%s7 + $0x78] sm:$0xff]
  %v2370 = vld [vmem:[%s7 + $0x80] sm:$0xff]
  %v2371 = vld [vmem:[%s7 + $0x88] sm:$0xff]
  %v2372 = vld [vmem:[%s7 + $0x90] sm:$0xff]
  %v2373 = vld [vmem:[%s7 + $0x98] sm:$0xff]
  %v2374 = vld [vmem:[%s7 + $0xa0] sm:$0xff]
  %v2375 = vld [vmem:[%s7 + $0xa8] sm:$0xff]
  %v2376 = vld [vmem:[%s7 + $0xb0] sm:$0xff]
  %v2377 = vld [vmem:[%s7 + $0xb8] sm:$0xff]
  %v2378 = vld [vmem:[%s7 + $0xc0] sm:$0xff]
  %v2379 = vld [vmem:[%s7 + $0xc8] sm:$0xff]
  %v2380 = vld [vmem:[%s7 + $0xd0] sm:$0xff]
  %v2381 = vld [vmem:[%s7 + $0xd8] sm:$0xff]
  %v2382 = vld [vmem:[%s7 + $0xe0] sm:$0xff]
  %v2383 = vld [vmem:[%s7 + $0xe8] sm:$0xff]
  %v2384 = vld [vmem:[%s7 + $0xf0] sm:$0xff]
  %v2385 = vld [vmem:[%s7 + $0xf8] sm:$0xff]
  %v2386 = vld [vmem:[%s8] sm:$0x3]
  %v2388 = vlaneseq
  %v2389 = vshrl.u32 %v2388, 7
  %v2390 = vsub.s32 0, %v2389
  %v2391 = vrot.slane %v2386, %v2390
  %v2392 = vlaneseq
  %v2393 = vshrl.u32 %v2392, 7
  %v2394 = vsub.s32 1, %v2393
  %v2395 = vrot.slane %v2386, %v2394
  %v2430 = vunpack.c.l.b16 %v2354
  %v2431 = vunpack.c.h.b16 %v2354
  %v2432 = vunpack.c.l.b16 %v2355
  %v2433 = vunpack.c.h.b16 %v2355
  %v2434 = vunpack.c.l.b16 %v2356
  %v2435 = vunpack.c.h.b16 %v2356
  %v2436 = vunpack.c.l.b16 %v2357
  %v2437 = vunpack.c.h.b16 %v2357
  %v2438 = vunpack.c.l.b16 %v2358
  %v2439 = vunpack.c.h.b16 %v2358
  %v2440 = vunpack.c.l.b16 %v2359
  %v2441 = vunpack.c.h.b16 %v2359
  %v2442 = vunpack.c.l.b16 %v2360
  %v2443 = vunpack.c.h.b16 %v2360
  %v2444 = vunpack.c.l.b16 %v2361
  %v2445 = vunpack.c.h.b16 %v2361
  %v2446 = vunpack.c.l.b16 %v2362
  %v2447 = vunpack.c.h.b16 %v2362
  %v2448 = vunpack.c.l.b16 %v2363
  %v2449 = vunpack.c.h.b16 %v2363
  %v2450 = vunpack.c.l.b16 %v2364
  %v2451 = vunpack.c.h.b16 %v2364
  %v2452 = vunpack.c.l.b16 %v2365
  %v2453 = vunpack.c.h.b16 %v2365
  %v2454 = vunpack.c.l.b16 %v2366
  %v2455 = vunpack.c.h.b16 %v2366
  %v2456 = vunpack.c.l.b16 %v2367
  %v2457 = vunpack.c.h.b16 %v2367
  %v2458 = vunpack.c.l.b16 %v2368
  %v2459 = vunpack.c.h.b16 %v2368
  %v2460 = vunpack.c.l.b16 %v2369
  %v2461 = vunpack.c.h.b16 %v2369
  %v2462 = vunpack.c.l.b16 %v2370
  %v2463 = vunpack.c.h.b16 %v2370
  %v2464 = vunpack.c.l.b16 %v2371
  %v2465 = vunpack.c.h.b16 %v2371
  %v2466 = vunpack.c.l.b16 %v2372
  %v2467 = vunpack.c.h.b16 %v2372
  %v2468 = vunpack.c.l.b16 %v2373
  %v2469 = vunpack.c.h.b16 %v2373
  %v2470 = vunpack.c.l.b16 %v2374
  %v2471 = vunpack.c.h.b16 %v2374
  %v2472 = vunpack.c.l.b16 %v2375
  %v2473 = vunpack.c.h.b16 %v2375
  %v2474 = vunpack.c.l.b16 %v2376
  %v2475 = vunpack.c.h.b16 %v2376
  %v2476 = vunpack.c.l.b16 %v2377
  %v2477 = vunpack.c.h.b16 %v2377
  %v2478 = vunpack.c.l.b16 %v2378
  %v2479 = vunpack.c.h.b16 %v2378
  %v2480 = vunpack.c.l.b16 %v2379
  %v2481 = vunpack.c.h.b16 %v2379
  %v2482 = vunpack.c.l.b16 %v2380
  %v2483 = vunpack.c.h.b16 %v2380
  %v2484 = vunpack.c.l.b16 %v2381
  %v2485 = vunpack.c.h.b16 %v2381
  %v2486 = vunpack.c.l.b16 %v2382
  %v2487 = vunpack.c.h.b16 %v2382
  %v2488 = vunpack.c.l.b16 %v2383
  %v2489 = vunpack.c.h.b16 %v2383
  %v2490 = vunpack.c.l.b16 %v2384
  %v2491 = vunpack.c.h.b16 %v2384
  %v2492 = vunpack.c.l.b16 %v2385
  %v2493 = vunpack.c.h.b16 %v2385
  %v2494 = vpack.c.b16 %v2432, %v2430
  %v2495 = vpack.c.b16 %v2433, %v2431
  %v2496 = vpack.c.b16 %v2436, %v2434
  %v2497 = vpack.c.b16 %v2437, %v2435
  %v2498 = vpack.c.b16 %v2440, %v2438
  %v2499 = vpack.c.b16 %v2441, %v2439
  %v2500 = vpack.c.b16 %v2444, %v2442
  %v2501 = vpack.c.b16 %v2445, %v2443
  %v2502 = vpack.c.b16 %v2448, %v2446
  %v2503 = vpack.c.b16 %v2449, %v2447
  %v2504 = vpack.c.b16 %v2452, %v2450
  %v2505 = vpack.c.b16 %v2453, %v2451
  %v2506 = vpack.c.b16 %v2456, %v2454
  %v2507 = vpack.c.b16 %v2457, %v2455
  %v2508 = vpack.c.b16 %v2460, %v2458
  %v2509 = vpack.c.b16 %v2461, %v2459
  %v2510 = vpack.c.b16 %v2464, %v2462
  %v2511 = vpack.c.b16 %v2465, %v2463
  %v2512 = vpack.c.b16 %v2468, %v2466
  %v2513 = vpack.c.b16 %v2469, %v2467
  %v2514 = vpack.c.b16 %v2472, %v2470
  %v2515 = vpack.c.b16 %v2473, %v2471
  %v2516 = vpack.c.b16 %v2476, %v2474
  %v2517 = vpack.c.b16 %v2477, %v2475
  %v2518 = vpack.c.b16 %v2480, %v2478
  %v2519 = vpack.c.b16 %v2481, %v2479
  %v2520 = vpack.c.b16 %v2484, %v2482
  %v2521 = vpack.c.b16 %v2485, %v2483
  %v2522 = vpack.c.b16 %v2488, %v2486
  %v2523 = vpack.c.b16 %v2489, %v2487
  %v2524 = vpack.c.b16 %v2492, %v2490
  %v2525 = vpack.c.b16 %v2493, %v2491
  %2558 = vmatprep.subr.bf16.mxu0 %v2495
  %2559 = vmatpush1.bf16.msra.mxu0 %v2494
  %2560 = vmatprep.subr.bf16.mxu0 %v2497
  %2561 = vmatpush1.bf16.msra.mxu0 %v2496
  %2562 = vmatprep.subr.bf16.mxu0 %v2499
  %2563 = vmatpush1.bf16.msra.mxu0 %v2498
  %2564 = vmatprep.subr.bf16.mxu0 %v2501
  %2565 = vmatpush1.bf16.msra.mxu0 %v2500
  %2566 = vmatprep.subr.bf16.mxu0 %v2503
  %2567 = vmatpush1.bf16.msra.mxu0 %v2502
  %2568 = vmatprep.subr.bf16.mxu0 %v2505
  %2569 = vmatpush1.bf16.msra.mxu0 %v2504
  %2570 = vmatprep.subr.bf16.mxu0 %v2507
  %2571 = vmatpush1.bf16.msra.mxu0 %v2506
  %2572 = vmatprep.subr.bf16.mxu0 %v2509
  %2573 = vmatpush1.bf16.msra.mxu0 %v2508
  %2574 = vmatprep.subr.bf16.mxu0 %v2511
  %2575 = vmatpush1.bf16.msra.mxu0 %v2510
  %2576 = vmatprep.subr.bf16.mxu0 %v2513
  %2577 = vmatpush1.bf16.msra.mxu0 %v2512
  %2578 = vmatprep.subr.bf16.mxu0 %v2515
  %2579 = vmatpush1.bf16.msra.mxu0 %v2514
  %2580 = vmatprep.subr.bf16.mxu0 %v2517
  %2581 = vmatpush1.bf16.msra.mxu0 %v2516
  %2582 = vmatprep.subr.bf16.mxu0 %v2519
  %2583 = vmatpush1.bf16.msra.mxu0 %v2518
  %2584 = vmatprep.subr.bf16.mxu0 %v2521
  %2585 = vmatpush1.bf16.msra.mxu0 %v2520
  %2586 = vmatprep.subr.bf16.mxu0 %v2523
  %2587 = vmatpush1.bf16.msra.mxu0 %v2522
  %2588 = vmatprep.subr.bf16.mxu0 %v2525
  %2589 = vmatpush1.bf16.msra.mxu0 %v2524
  %2590 = vmatprep.mubr.bf16.mxu0 %v2353
  %2591 = vmatmul.mubr.bf16.gmra.mrb[0].mxu0 %v2352
  %v2592 = vpop.f32.mrb[0].mxu0
  %v2593 = vadd.f32 %v2391, %v2592
  %v2594 = vpop.f32.mrb[0].mxu0
  %v2595 = vadd.f32 %v2395, %v2594
  %v2596 = vpop.f32.mrb[0].mxu0
  %v2597 = vadd.f32 %v2391, %v2596
  %v2598 = vpop.f32.mrb[0].mxu0
  %v2599 = vadd.f32 %v2395, %v2598
  %2600 = vdwg.mxu0
  %v2601 = vsub.f32 0.0, %v2593
  %v2602 = vsub.f32 0.0, %v2595
  %v2603 = vsub.f32 0.0, %v2597
  %v2604 = vsub.f32 0.0, %v2599
  %v2605 = vmul.f32 %v2601, 1.442695
  %v2606 = vpow.pop %v2605
  %v2607 = vmul.f32 %v2602, 1.442695
  %v2608 = vpow.pop %v2607
  %v2609 = vmul.f32 %v2603, 1.442695
  %v2610 = vpow.pop %v2609
  %v2611 = vmul.f32 %v2604, 1.442695
  %v2612 = vpow.pop %v2611
  %v2613 = vadd.f32 %v2606, 1.0
  %v2614 = vadd.f32 %v2608, 1.0
  %v2615 = vadd.f32 %v2610, 1.0
  %v2616 = vadd.f32 %v2612, 1.0
  %v2617 = vrcp.pop %v2613
  %v2618 = vmul.f32 %v2593, %v2617
  %v2619 = vrcp.pop %v2614
  %v2620 = vmul.f32 %v2595, %v2619
  %v2621 = vrcp.pop %v2615
  %v2622 = vmul.f32 %v2597, %v2621
  %v2623 = vrcp.pop %v2616
  %v2624 = vmul.f32 %v2599, %v2623
  %v2625 = vpack.c.bf16 %v2622, %v2618
  %v2626 = vpack.c.bf16 %v2624, %v2620
  %v2627 = vld [vmem:[%s9] sm:$0xff]
  %v2628 = vld [vmem:[%s9 + $0x8] sm:$0xf]
  %v2629 = vld [vmem:[%s9 + $0xc] sm:$0xff]
  %v2630 = vld [vmem:[%s9 + $0x14] sm:$0xf]
  %v2631 = vld [vmem:[%s9 + $0x18] sm:$0xff]
  %v2632 = vld [vmem:[%s9 + $0x20] sm:$0xf]
  %v2633 = vld [vmem:[%s9 + $0x24] sm:$0xff]
  %v2634 = vld [vmem:[%s9 + $0x2c] sm:$0xf]
  %v2635 = vld [vmem:[%s9 + $0x30] sm:$0xff]
  %v2636 = vld [vmem:[%s9 + $0x38] sm:$0xf]
  %v2637 = vld [vmem:[%s9 + $0x3c] sm:$0xff]
  %v2638 = vld [vmem:[%s9 + $0x44] sm:$0xf]
  %v2639 = vld [vmem:[%s9 + $0x48] sm:$0xff]
  %v2640 = vld [vmem:[%s9 + $0x50] sm:$0xf]
  %v2641 = vld [vmem:[%s9 + $0x54] sm:$0xff]
  %v2642 = vld [vmem:[%s9 + $0x5c] sm:$0xf]
  %v2643 = vld [vmem:[%s9 + $0x60] sm:$0xff]
  %v2644 = vld [vmem:[%s9 + $0x68] sm:$0xf]
  %v2645 = vld [vmem:[%s9 + $0x6c] sm:$0xff]
  %v2646 = vld [vmem:[%s9 + $0x74] sm:$0xf]
  %v2647 = vld [vmem:[%s9 + $0x78] sm:$0xff]
  %v2648 = vld [vmem:[%s9 + $0x80] sm:$0xf]
  %v2649 = vld [vmem:[%s9 + $0x84] sm:$0xff]
  %v2650 = vld [vmem:[%s9 + $0x8c] sm:$0xf]
  %v2651 = vld [vmem:[%s9 + $0x90] sm:$0xff]
  %v2652 = vld [vmem:[%s9 + $0x98] sm:$0xf]
  %v2653 = vld [vmem:[%s9 + $0x9c] sm:$0xff]
  %v2654 = vld [vmem:[%s9 + $0xa4] sm:$0xf]
  %v2655 = vld [vmem:[%s9 + $0xa8] sm:$0xff]
  %v2656 = vld [vmem:[%s9 + $0xb0] sm:$0xf]
  %v2657 = vld [vmem:[%s9 + $0xb4] sm:$0xff]
  %v2658 = vld [vmem:[%s9 + $0xbc] sm:$0xf]
  %v2659 = vld [vmem:[%s9 + $0xc0] sm:$0xff]
  %v2660 = vld [vmem:[%s9 + $0xc8] sm:$0xf]
  %v2661 = vld [vmem:[%s9 + $0xcc] sm:$0xff]
  %v2662 = vld [vmem:[%s9 + $0xd4] sm:$0xf]
  %v2663 = vld [vmem:[%s9 + $0xd8] sm:$0xff]
  %v2664 = vld [vmem:[%s9 + $0xe0] sm:$0xf]
  %v2665 = vld [vmem:[%s9 + $0xe4] sm:$0xff]
  %v2666 = vld [vmem:[%s9 + $0xec] sm:$0xf]
  %v2667 = vld [vmem:[%s9 + $0xf0] sm:$0xff]
  %v2668 = vld [vmem:[%s9 + $0xf8] sm:$0xf]
  %v2669 = vld [vmem:[%s9 + $0xfc] sm:$0xff]
  %v2670 = vld [vmem:[%s9 + $0x104] sm:$0xf]
  %v2671 = vld [vmem:[%s9 + $0x108] sm:$0xff]
  %v2672 = vld [vmem:[%s9 + $0x110] sm:$0xf]
  %v2673 = vld [vmem:[%s9 + $0x114] sm:$0xff]
  %v2674 = vld [vmem:[%s9 + $0x11c] sm:$0xf]
  %v2675 = vld [vmem:[%s9 + $0x120] sm:$0xff]
  %v2676 = vld [vmem:[%s9 + $0x128] sm:$0xf]
  %v2677 = vld [vmem:[%s9 + $0x12c] sm:$0xff]
  %v2678 = vld [vmem:[%s9 + $0x134] sm:$0xf]
  %v2679 = vld [vmem:[%s9 + $0x138] sm:$0xff]
  %v2680 = vld [vmem:[%s9 + $0x140] sm:$0xf]
  %v2681 = vld [vmem:[%s9 + $0x144] sm:$0xff]
  %v2682 = vld [vmem:[%s9 + $0x14c] sm:$0xf]
  %v2683 = vld [vmem:[%s9 + $0x150] sm:$0xff]
  %v2684 = vld [vmem:[%s9 + $0x158] sm:$0xf]
  %v2685 = vld [vmem:[%s9 + $0x15c] sm:$0xff]
  %v2686 = vld [vmem:[%s9 + $0x164] sm:$0xf]
  %v2687 = vld [vmem:[%s9 + $0x168] sm:$0xff]
  %v2688 = vld [vmem:[%s9 + $0x170] sm:$0xf]
  %v2689 = vld [vmem:[%s9 + $0x174] sm:$0xff]
  %v2690 = vld [vmem:[%s9 + $0x17c] sm:$0xf]
  %v2691 = vld [vmem:[%s10] sm:$0x7]
  %v2693 = vlaneseq
  %v2694 = vshrl.u32 %v2693, 7
  %v2695 = vsub.s32 0, %v2694
  %v2696 = vrot.slane %v2691, %v2695
  %v2697 = vlaneseq
  %v2698 = vshrl.u32 %v2697, 7
  %v2699 = vsub.s32 1, %v2698
  %v2700 = vrot.slane %v2691, %v2699
  %v2701 = vlaneseq
  %v2702 = vshrl.u32 %v2701, 7
  %v2703 = vsub.s32 2, %v2702
  %v2704 = vrot.slane %v2691, %v2703
  %v2772 = vunpack.c.l.b16 %v2627
  %v2773 = vunpack.c.h.b16 %v2627
  %v2774 = vunpack.c.l.b16 %v2628
  %v2775 = vunpack.c.l.b16 %v2629
  %v2776 = vunpack.c.h.b16 %v2629
  %v2777 = vunpack.c.l.b16 %v2630
  %v2778 = vunpack.c.l.b16 %v2631
  %v2779 = vunpack.c.h.b16 %v2631
  %v2780 = vunpack.c.l.b16 %v2632
  %v2781 = vunpack.c.l.b16 %v2633
  %v2782 = vunpack.c.h.b16 %v2633
  %v2783 = vunpack.c.l.b16 %v2634
  %v2784 = vunpack.c.l.b16 %v2635
  %v2785 = vunpack.c.h.b16 %v2635
  %v2786 = vunpack.c.l.b16 %v2636
  %v2787 = vunpack.c.l.b16 %v2637
  %v2788 = vunpack.c.h.b16 %v2637
  %v2789 = vunpack.c.l.b16 %v2638
  %v2790 = vunpack.c.l.b16 %v2639
  %v2791 = vunpack.c.h.b16 %v2639
  %v2792 = vunpack.c.l.b16 %v2640
  %v2793 = vunpack.c.l.b16 %v2641
  %v2794 = vunpack.c.h.b16 %v2641
  %v2795 = vunpack.c.l.b16 %v2642
  %v2796 = vunpack.c.l.b16 %v2643
  %v2797 = vunpack.c.h.b16 %v2643
  %v2798 = vunpack.c.l.b16 %v2644
  %v2799 = vunpack.c.l.b16 %v2645
  %v2800 = vunpack.c.h.b16 %v2645
  %v2801 = vunpack.c.l.b16 %v2646
  %v2802 = vunpack.c.l.b16 %v2647
  %v2803 = vunpack.c.h.b16 %v2647
  %v2804 = vunpack.c.l.b16 %v2648
  %v2805 = vunpack.c.l.b16 %v2649
  %v2806 = vunpack.c.h.b16 %v2649
  %v2807 = vunpack.c.l.b16 %v2650
  %v2808 = vunpack.c.l.b16 %v2651
  %v2809 = vunpack.c.h.b16 %v2651
  %v2810 = vunpack.c.l.b16 %v2652
  %v2811 = vunpack.c.l.b16 %v2653
  %v2812 = vunpack.c.h.b16 %v2653
  %v2813 = vunpack.c.l.b16 %v2654
  %v2814 = vunpack.c.l.b16 %v2655
  %v2815 = vunpack.c.h.b16 %v2655
  %v2816 = vunpack.c.l.b16 %v2656
  %v2817 = vunpack.c.l.b16 %v2657
  %v2818 = vunpack.c.h.b16 %v2657
  %v2819 = vunpack.c.l.b16 %v2658
  %v2820 = vunpack.c.l.b16 %v2659
  %v2821 = vunpack.c.h.b16 %v2659
  %v2822 = vunpack.c.l.b16 %v2660
  %v2823 = vunpack.c.l.b16 %v2661
  %v2824 = vunpack.c.h.b16 %v2661
  %v2825 = vunpack.c.l.b16 %v2662
  %v2826 = vunpack.c.l.b16 %v2663
  %v2827 = vunpack.c.h.b16 %v2663
  %v2828 = vunpack.c.l.b16 %v2664
  %v2829 = vunpack.c.l.b16 %v2665
  %v2830 = vunpack.c.h.b16 %v2665
  %v2831 = vunpack.c.l.b16 %v2666
  %v2832 = vunpack.c.l.b16 %v2667
  %v2833 = vunpack.c.h.b16 %v2667
  %v2834 = vunpack.c.l.b16 %v2668
  %v2835 = vunpack.c.l.b16 %v2669
  %v2836 = vunpack.c.h.b16 %v2669
  %v2837 = vunpack.c.l.b16 %v2670
  %v2838 = vunpack.c.l.b16 %v2671
  %v2839 = vunpack.c.h.b16 %v2671
  %v2840 = vunpack.c.l.b16 %v2672
  %v2841 = vunpack.c.l.b16 %v2673
  %v2842 = vunpack.c.h.b16 %v2673
  %v2843 = vunpack.c.l.b16 %v2674
  %v2844 = vunpack.c.l.b16 %v2675
  %v2845 = vunpack.c.h.b16 %v2675
  %v2846 = vunpack.c.l.b16 %v2676
  %v2847 = vunpack.c.l.b16 %v2677
  %v2848 = vunpack.c.h.b16 %v2677
  %v2849 = vunpack.c.l.b16 %v2678
  %v2850 = vunpack.c.l.b16 %v2679
  %v2851 = vunpack.c.h.b16 %v2679
  %v2852 = vunpack.c.l.b16 %v2680
  %v2853 = vunpack.c.l.b16 %v2681
  %v2854 = vunpack.c.h.b16 %v2681
  %v2855 = vunpack.c.l.b16 %v2682
  %v2856 = vunpack.c.l.b16 %v2683
  %v2857 = vunpack.c.h.b16 %v2683
  %v2858 = vunpack.c.l.b16 %v2684
  %v2859 = vunpack.c.l.b16 %v2685
  %v2860 = vunpack.c.h.b16 %v2685
  %v2861 = vunpack.c.l.b16 %v2686
  %v2862 = vunpack.c.l.b16 %v2687
  %v2863 = vunpack.c.h.b16 %v2687
  %v2864 = vunpack.c.l.b16 %v2688
  %v2865 = vunpack.c.l.b16 %v2689
  %v2866 = vunpack.c.h.b16 %v2689
  %v2867 = vunpack.c.l.b16 %v2690
  %v2868 = vpack.c.b16 %v2775, %v2772
  %v2869 = vpack.c.b16 %v2776, %v2773
  %v2870 = vpack.c.b16 %v2777, %v2774
  %v2871 = vpack.c.b16 %v2781, %v2778
  %v2872 = vpack.c.b16 %v2782, %v2779
  %v2873 = vpack.c.b16 %v2783, %v2780
  %v2874 = vpack.c.b16 %v2787, %v2784
  %v2875 = vpack.c.b16 %v2788, %v2785
  %v2876 = vpack.c.b16 %v2789, %v2786
  %v2877 = vpack.c.b16 %v2793, %v2790
  %v2878 = vpack.c.b16 %v2794, %v2791
  %v2879 = vpack.c.b16 %v2795, %v2792
  %v2880 = vpack.c.b16 %v2799, %v2796
  %v2881 = vpack.c.b16 %v2800, %v2797
  %v2882 = vpack.c.b16 %v2801, %v2798
  %v2883 = vpack.c.b16 %v2805, %v2802
  %v2884 = vpack.c.b16 %v2806, %v2803
  %v2885 = vpack.c.b16 %v2807, %v2804
  %v2886 = vpack.c.b16 %v2811, %v2808
  %v2887 = vpack.c.b16 %v2812, %v2809
  %v2888 = vpack.c.b16 %v2813, %v2810
  %v2889 = vpack.c.b16 %v2817, %v2814
  %v2890 = vpack.c.b16 %v2818, %v2815
  %v2891 = vpack.c.b16 %v2819, %v2816
  %v2892 = vpack.c.b16 %v2823, %v2820
  %v2893 = vpack.c.b16 %v2824, %v2821
  %v2894 = vpack.c.b16 %v2825, %v2822
  %v2895 = vpack.c.b16 %v2829, %v2826
  %v2896 = vpack.c.b16 %v2830, %v2827
  %v2897 = vpack.c.b16 %v2831, %v2828
  %v2898 = vpack.c.b16 %v2835, %v2832
  %v2899 = vpack.c.b16 %v2836, %v2833
  %v2900 = vpack.c.b16 %v2837, %v2834
  %v2901 = vpack.c.b16 %v2841, %v2838
  %v2902 = vpack.c.b16 %v2842, %v2839
  %v2903 = vpack.c.b16 %v2843, %v2840
  %v2904 = vpack.c.b16 %v2847, %v2844
  %v2905 = vpack.c.b16 %v2848, %v2845
  %v2906 = vpack.c.b16 %v2849, %v2846
  %v2907 = vpack.c.b16 %v2853, %v2850
  %v2908 = vpack.c.b16 %v2854, %v2851
  %v2909 = vpack.c.b16 %v2855, %v2852
  %v2910 = vpack.c.b16 %v2859, %v2856
  %v2911 = vpack.c.b16 %v2860, %v2857
  %v2912 = vpack.c.b16 %v2861, %v2858
  %v2913 = vpack.c.b16 %v2865, %v2862
  %v2914 = vpack.c.b16 %v2866, %v2863
  %v2915 = vpack.c.b16 %v2867, %v2864
  %2964 = vmatprep.subr.bf16.mxu0 %v2869
  %2965 = vmatpush1.bf16.msra.mxu0 %v2868
  %2966 = vmatprep.subr.bf16.mxu0 %v2872
  %2967 = vmatpush1.bf16.msra.mxu0 %v2871
  %2968 = vmatprep.subr.bf16.mxu0 %v2875
  %2969 = vmatpush1.bf16.msra.mxu0 %v2874
  %2970 = vmatprep.subr.bf16.mxu0 %v2878
  %2971 = vmatpush1.bf16.msra.mxu0 %v2877
  %2972 = vmatprep.subr.bf16.mxu0 %v2881
  %2973 = vmatpush1.bf16.msra.mxu0 %v2880
  %2974 = vmatprep.subr.bf16.mxu0 %v2884
  %2975 = vmatpush1.bf16.msra.mxu0 %v2883
  %2976 = vmatprep.subr.bf16.mxu0 %v2887
  %2977 = vmatpush1.bf16.msra.mxu0 %v2886
  %2978 = vmatprep.subr.bf16.mxu0 %v2890
  %2979 = vmatpush1.bf16.msra.mxu0 %v2889
  %2980 = vmatprep.subr.bf16.mxu0 %v2893
  %2981 = vmatpush1.bf16.msra.mxu0 %v2892
  %2982 = vmatprep.subr.bf16.mxu0 %v2896
  %2983 = vmatpush1.bf16.msra.mxu0 %v2895
  %2984 = vmatprep.subr.bf16.mxu0 %v2899
  %2985 = vmatpush1.bf16.msra.mxu0 %v2898
  %2986 = vmatprep.subr.bf16.mxu0 %v2902
  %2987 = vmatpush1.bf16.msra.mxu0 %v2901
  %2988 = vmatprep.subr.bf16.mxu0 %v2905
  %2989 = vmatpush1.bf16.msra.mxu0 %v2904
  %2990 = vmatprep.subr.bf16.mxu0 %v2908
  %2991 = vmatpush1.bf16.msra.mxu0 %v2907
  %2992 = vmatprep.subr.bf16.mxu0 %v2911
  %2993 = vmatpush1.bf16.msra.mxu0 %v2910
  %2994 = vmatprep.subr.bf16.mxu0 %v2914
  %2995 = vmatpush1.bf16.msra.mxu0 %v2913
  %2996 = vmatprep.mubr.bf16.mxu0 %v2626
  %2997 = vmatmul.mubr.bf16.gmra.mrb[0].mxu0 %v2625
  %v2998 = vpop.f32.mrb[0].mxu0
  %v2999 = vadd.f32 %v2696, %v2998
  %v3000 = vpop.f32.mrb[0].mxu0
  %v3001 = vadd.f32 %v2700, %v3000
  %v3002 = vpop.f32.mrb[0].mxu0
  %v3003 = vadd.f32 %v2696, %v3002
  %v3004 = vpop.f32.mrb[0].mxu0
  %v3005 = vadd.f32 %v2700, %v3004
  %3006 = vdwg.mxu0
  %3007 = vmatprep.subr.bf16.mxu0 0
  %3008 = vmatpush1.bf16.msra.mxu0 %v2870
  %3009 = vmatprep.subr.bf16.mxu0 0
  %3010 = vmatpush1.bf16.msra.mxu0 %v2873
  %3011 = vmatprep.subr.bf16.mxu0 0
  %3012 = vmatpush1.bf16.msra.mxu0 %v2876
  %3013 = vmatprep.subr.bf16.mxu0 0
  %3014 = vmatpush1.bf16.msra.mxu0 %v2879
  %3015 = vmatprep.subr.bf16.mxu0 0
  %3016 = vmatpush1.bf16.msra.mxu0 %v2882
  %3017 = vmatprep.subr.bf16.mxu0 0
  %3018 = vmatpush1.bf16.msra.mxu0 %v2885
  %3019 = vmatprep.subr.bf16.mxu0 0
  %3020 = vmatpush1.bf16.msra.mxu0 %v2888
  %3021 = vmatprep.subr.bf16.mxu0 0
  %3022 = vmatpush1.bf16.msra.mxu0 %v2891
  %3023 = vmatprep.subr.bf16.mxu0 0
  %3024 = vmatpush1.bf16.msra.mxu0 %v2894
  %3025 = vmatprep.subr.bf16.mxu0 0
  %3026 = vmatpush1.bf16.msra.mxu0 %v2897
  %3027 = vmatprep.subr.bf16.mxu0 0
  %3028 = vmatpush1.bf16.msra.mxu0 %v2900
  %3029 = vmatprep.subr.bf16.mxu0 0
  %3030 = vmatpush1.bf16.msra.mxu0 %v2903
  %3031 = vmatprep.subr.bf16.mxu0 0
  %3032 = vmatpush1.bf16.msra.mxu0 %v2906
  %3033 = vmatprep.subr.bf16.mxu0 0
  %3034 = vmatpush1.bf16.msra.mxu0 %v2909
  %3035 = vmatprep.subr.bf16.mxu0 0
  %3036 = vmatpush1.bf16.msra.mxu0 %v2912
  %3037 = vmatprep.subr.bf16.mxu0 0
  %3038 = vmatpush1.bf16.msra.mxu0 %v2915
  %3039 = vmatprep.mubr.bf16.mxu0 %v2626
  %3040 = vmatmul.mubr.bf16.gmra.mrb[0].mxu0 %v2625
  %v3041 = vpop.f32.mrb[0].mxu0
  %v3042 = vadd.f32 %v2704, %v3041
  %v3043 = vpop.f32.mrb[0].mxu0
  %v3044 = vpop.f32.mrb[0].mxu0
  %v3045 = vadd.f32 %v2704, %v3044
  %v3046 = vpop.f32.mrb[0].mxu0
  %3047 = vdwg.mxu0
  %3048 = vst [vmem:[%s15] sm:$0xff] %v2999
  %3049 = vst [vmem:[%s15 + $0x8] sm:$0xff] %v3001
  %3050 = vst [vmem:[%s15 + $0x10] sm:$0xff] %v3042
  %3051 = vst [vmem:[%s15 + $0x18] sm:$0xff] %v3003
  %3052 = vst [vmem:[%s15 + $0x20] sm:$0xff] %v3005
  %3053 = vst [vmem:[%s15 + $0x28] sm:$0xff] %v3045
  %v3054 = vld [vmem:[%s11] sm:$0xf]
  %v3055 = vld [vmem:[%s11 + $0x4] sm:$0xf]
  %v3056 = vld [vmem:[%s11 + $0x8] sm:$0xf]
  %v3057 = vld [vmem:[%s11 + $0xc] sm:$0xf]
  %v3058 = vld [vmem:[%s11 + $0x10] sm:$0xf]
  %v3059 = vld [vmem:[%s11 + $0x14] sm:$0xf]
  %v3060 = vld [vmem:[%s11 + $0x18] sm:$0xf]
  %v3061 = vld [vmem:[%s11 + $0x1c] sm:$0xf]
  %v3062 = vld [vmem:[%s11 + $0x20] sm:$0xf]
  %v3063 = vld [vmem:[%s11 + $0x24] sm:$0xf]
  %v3064 = vld [vmem:[%s11 + $0x28] sm:$0xf]
  %v3065 = vld [vmem:[%s11 + $0x2c] sm:$0xf]
  %v3066 = vld [vmem:[%s11 + $0x30] sm:$0xf]
  %v3067 = vld [vmem:[%s11 + $0x34] sm:$0xf]
  %v3068 = vld [vmem:[%s11 + $0x38] sm:$0xf]
  %v3069 = vld [vmem:[%s11 + $0x3c] sm:$0xf]
  %v3070 = vld [vmem:[%s11 + $0x40] sm:$0xf]
  %v3071 = vld [vmem:[%s11 + $0x44] sm:$0xf]
  %v3072 = vld [vmem:[%s11 + $0x48] sm:$0xf]
  %v3073 = vld [vmem:[%s11 + $0x4c] sm:$0xf]
  %v3074 = vld [vmem:[%s11 + $0x50] sm:$0xf]
  %v3075 = vld [vmem:[%s11 + $0x54] sm:$0xf]
  %v3076 = vld [vmem:[%s11 + $0x58] sm:$0xf]
  %v3077 = vld [vmem:[%s11 + $0x5c] sm:$0xf]
  %v3078 = vld [vmem:[%s11 + $0x60] sm:$0xf]
  %v3079 = vld [vmem:[%s11 + $0x64] sm:$0xf]
  %v3080 = vld [vmem:[%s11 + $0x68] sm:$0xf]
  %v3081 = vld [vmem:[%s11 + $0x6c] sm:$0xf]
  %v3082 = vld [vmem:[%s11 + $0x70] sm:$0xf]
  %v3083 = vld [vmem:[%s11 + $0x74] sm:$0xf]
  %v3084 = vld [vmem:[%s11 + $0x78] sm:$0xf]
  %v3085 = vld [vmem:[%s11 + $0x7c] sm:$0xf]
  %v3086 = vld [vmem:[%s12] sm:$0x1]
  %v3088 = vlaneseq
  %v3089 = vshrl.u32 %v3088, 7
  %v3090 = vsub.s32 0, %v3089
  %v3091 = vrot.slane %v3086, %v3090
  %v3125 = vunpack.c.l.b16 %v3054
  %v3126 = vunpack.c.l.b16 %v3055
  %v3127 = vunpack.c.l.b16 %v3056
  %v3128 = vunpack.c.l.b16 %v3057
  %v3129 = vunpack.c.l.b16 %v3058
  %v3130 = vunpack.c.l.b16 %v3059
  %v3131 = vunpack.c.l.b16 %v3060
  %v3132 = vunpack.c.l.b16 %v3061
  %v3133 = vunpack.c.l.b16 %v3062
  %v3134 = vunpack.c.l.b16 %v3063
  %v3135 = vunpack.c.l.b16 %v3064
  %v3136 = vunpack.c.l.b16 %v3065
  %v3137 = vunpack.c.l.b16 %v3066
  %v3138 = vunpack.c.l.b16 %v3067
  %v3139 = vunpack.c.l.b16 %v3068
  %v3140 = vunpack.c.l.b16 %v3069
  %v3141 = vunpack.c.l.b16 %v3070
  %v3142 = vunpack.c.l.b16 %v3071
  %v3143 = vunpack.c.l.b16 %v3072
  %v3144 = vunpack.c.l.b16 %v3073
  %v3145 = vunpack.c.l.b16 %v3074
  %v3146 = vunpack.c.l.b16 %v3075
  %v3147 = vunpack.c.l.b16 %v3076
  %v3148 = vunpack.c.l.b16 %v3077
  %v3149 = vunpack.c.l.b16 %v3078
  %v3150 = vunpack.c.l.b16 %v3079
  %v3151 = vunpack.c.l.b16 %v3080
  %v3152 = vunpack.c.l.b16 %v3081
  %v3153 = vunpack.c.l.b16 %v3082
  %v3154 = vunpack.c.l.b16 %v3083
  %v3155 = vunpack.c.l.b16 %v3084
  %v3156 = vunpack.c.l.b16 %v3085
  %v3157 = vpack.c.b16 %v3126, %v3125
  %v3158 = vpack.c.b16 %v3128, %v3127
  %v3159 = vpack.c.b16 %v3130, %v3129
  %v3160 = vpack.c.b16 %v3132, %v3131
  %v3161 = vpack.c.b16 %v3134, %v3133
  %v3162 = vpack.c.b16 %v3136, %v3135
  %v3163 = vpack.c.b16 %v3138, %v3137
  %v3164 = vpack.c.b16 %v3140, %v3139
  %v3165 = vpack.c.b16 %v3142, %v3141
  %v3166 = vpack.c.b16 %v3144, %v3143
  %v3167 = vpack.c.b16 %v3146, %v3145
  %v3168 = vpack.c.b16 %v3148, %v3147
  %v3169 = vpack.c.b16 %v3150, %v3149
  %v3170 = vpack.c.b16 %v3152, %v3151
  %v3171 = vpack.c.b16 %v3154, %v3153
  %v3172 = vpack.c.b16 %v3156, %v3155
  %3189 = vmatprep.subr.bf16.mxu0 0
  %3190 = vmatpush1.bf16.msra.mxu0 %v3157
  %3191 = vmatprep.subr.bf16.mxu0 0
  %3192 = vmatpush1.bf16.msra.mxu0 %v3158
  %3193 = vmatprep.subr.bf16.mxu0 0
  %3194 = vmatpush1.bf16.msra.mxu0 %v3159
  %3195 = vmatprep.subr.bf16.mxu0 0
  %3196 = vmatpush1.bf16.msra.mxu0 %v3160
  %3197 = vmatprep.subr.bf16.mxu0 0
  %3198 = vmatpush1.bf16.msra.mxu0 %v3161
  %3199 = vmatprep.subr.bf16.mxu0 0
  %3200 = vmatpush1.bf16.msra.mxu0 %v3162
  %3201 = vmatprep.subr.bf16.mxu0 0
  %3202 = vmatpush1.bf16.msra.mxu0 %v3163
  %3203 = vmatprep.subr.bf16.mxu0 0
  %3204 = vmatpush1.bf16.msra.mxu0 %v3164
  %3205 = vmatprep.subr.bf16.mxu0 0
  %3206 = vmatpush1.bf16.msra.mxu0 %v3165
  %3207 = vmatprep.subr.bf16.mxu0 0
  %3208 = vmatpush1.bf16.msra.mxu0 %v3166
  %3209 = vmatprep.subr.bf16.mxu0 0
  %3210 = vmatpush1.bf16.msra.mxu0 %v3167
  %3211 = vmatprep.subr.bf16.mxu0 0
  %3212 = vmatpush1.bf16.msra.mxu0 %v3168
  %3213 = vmatprep.subr.bf16.mxu0 0
  %3214 = vmatpush1.bf16.msra.mxu0 %v3169
  %3215 = vmatprep.subr.bf16.mxu0 0
  %3216 = vmatpush1.bf16.msra.mxu0 %v3170
  %3217 = vmatprep.subr.bf16.mxu0 0
  %3218 = vmatpush1.bf16.msra.mxu0 %v3171
  %3219 = vmatprep.subr.bf16.mxu0 0
  %3220 = vmatpush1.bf16.msra.mxu0 %v3172
  %3221 = vmatprep.mubr.bf16.mxu0 %v2353
  %3222 = vmatmul.mubr.bf16.gmra.mrb[0].mxu0 %v2352
  %v3223 = vpop.f32.mrb[0].mxu0
  %v3224 = vadd.f32 %v3091, %v3223
  %v3225 = vpop.f32.mrb[0].mxu0
  %v3226 = vpop.f32.mrb[0].mxu0
  %v3227 = vadd.f32 %v3091, %v3226
  %v3228 = vpop.f32.mrb[0].mxu0
  %3229 = vdwg.mxu0
  %v3230 = vsub.f32 0.0, %v3224
  %v3231 = vsub.f32 0.0, %v3227
  %v3232 = vmul.f32 %v3230, 1.442695
  %v3233 = vpow.pop %v3232
  %v3234 = vmul.f32 %v3231, 1.442695
  %v3235 = vpow.pop %v3234
  %v3236 = vadd.f32 %v3233, 1.0
  %v3237 = vadd.f32 %v3235, 1.0
  %v3238 = vrcp.pop %v3236
  %v3239 = vmul.f32 %v3224, %v3238
  %v3240 = vrcp.pop %v3237
  %v3241 = vmul.f32 %v3227, %v3240
  %v3242 = vpack.c.bf16 %v3241, %v3239
  %v3243 = vld [vmem:[%s13] sm:$0xf]
  %v3244 = vld [vmem:[%s13 + $0x4] sm:$0xf]
  %v3245 = vld [vmem:[%s13 + $0x8] sm:$0xf]
  %v3246 = vld [vmem:[%s13 + $0xc] sm:$0xf]
  %v3247 = vld [vmem:[%s13 + $0x10] sm:$0xf]
  %v3248 = vld [vmem:[%s13 + $0x14] sm:$0xf]
  %v3249 = vld [vmem:[%s13 + $0x18] sm:$0xf]
  %v3250 = vld [vmem:[%s13 + $0x1c] sm:$0xf]
  %v3251 = vld [vmem:[%s13 + $0x20] sm:$0xf]
  %v3252 = vld [vmem:[%s13 + $0x24] sm:$0xf]
  %v3253 = vld [vmem:[%s13 + $0x28] sm:$0xf]
  %v3254 = vld [vmem:[%s13 + $0x2c] sm:$0xf]
  %v3255 = vld [vmem:[%s13 + $0x30] sm:$0xf]
  %v3256 = vld [vmem:[%s13 + $0x34] sm:$0xf]
  %v3257 = vld [vmem:[%s13 + $0x38] sm:$0xf]
  %v3258 = vld [vmem:[%s13 + $0x3c] sm:$0xf]
  %v3259 = vld [vmem:[%s14] sm:$0x1]
  %v3261 = vlaneseq
  %v3262 = vshrl.u32 %v3261, 7
  %v3263 = vsub.s32 0, %v3262
  %v3264 = vrot.slane %v3259, %v3263
  %v3282 = vunpack.c.l.b16 %v3243
  %v3283 = vunpack.c.l.b16 %v3244
  %v3284 = vunpack.c.l.b16 %v3245
  %v3285 = vunpack.c.l.b16 %v3246
  %v3286 = vunpack.c.l.b16 %v3247
  %v3287 = vunpack.c.l.b16 %v3248
  %v3288 = vunpack.c.l.b16 %v3249
  %v3289 = vunpack.c.l.b16 %v3250
  %v3290 = vunpack.c.l.b16 %v3251
  %v3291 = vunpack.c.l.b16 %v3252
  %v3292 = vunpack.c.l.b16 %v3253
  %v3293 = vunpack.c.l.b16 %v3254
  %v3294 = vunpack.c.l.b16 %v3255
  %v3295 = vunpack.c.l.b16 %v3256
  %v3296 = vunpack.c.l.b16 %v3257
  %v3297 = vunpack.c.l.b16 %v3258
  %v3298 = vpack.c.b16 %v3283, %v3282
  %v3299 = vpack.c.b16 %v3285, %v3284
  %v3300 = vpack.c.b16 %v3287, %v3286
  %v3301 = vpack.c.b16 %v3289, %v3288
  %v3302 = vpack.c.b16 %v3291, %v3290
  %v3303 = vpack.c.b16 %v3293, %v3292
  %v3304 = vpack.c.b16 %v3295, %v3294
  %v3305 = vpack.c.b16 %v3297, %v3296
  %3314 = vmatprep.subr.bf16.mxu0 0
  %3315 = vmatpush1.bf16.msra.mxu0 %v3298
  %3316 = vmatprep.subr.bf16.mxu0 0
  %3317 = vmatpush1.bf16.msra.mxu0 %v3299
  %3318 = vmatprep.subr.bf16.mxu0 0
  %3319 = vmatpush1.bf16.msra.mxu0 %v3300
  %3320 = vmatprep.subr.bf16.mxu0 0
  %3321 = vmatpush1.bf16.msra.mxu0 %v3301
  %3322 = vmatprep.subr.bf16.mxu0 0
  %3323 = vmatpush1.bf16.msra.mxu0 %v3302
  %3324 = vmatprep.subr.bf16.mxu0 0
  %3325 = vmatpush1.bf16.msra.mxu0 %v3303
  %3326 = vmatprep.subr.bf16.mxu0 0
  %3327 = vmatpush1.bf16.msra.mxu0 %v3304
  %3328 = vmatprep.subr.bf16.mxu0 0
  %3329 = vmatpush1.bf16.msra.mxu0 %v3305
  %3330 = vmatprep.subr.bf16.mxu0 0
  %3331 = vmatpush1.bf16.msra.mxu0 0
  %3332 = vmatprep.subr.bf16.mxu0 0
  %3333 = vmatpush1.bf16.msra.mxu0 0
  %3334 = vmatprep.subr.bf16.mxu0 0
  %3335 = vmatpush1.bf16.msra.mxu0 0
  %3336 = vmatprep.subr.bf16.mxu0 0
  %3337 = vmatpush1.bf16.msra.mxu0 0
  %3338 = vmatprep.subr.bf16.mxu0 0
  %3339 = vmatpush1.bf16.msra.mxu0 0
  %3340 = vmatprep.subr.bf16.mxu0 0
  %3341 = vmatpush1.bf16.msra.mxu0 0
  %3342 = vmatprep.subr.bf16.mxu0 0
  %3343 = vmatpush1.bf16.msra.mxu0 0
  %3344 = vmatprep.subr.bf16.mxu0 0
  %3345 = vmatpush1.bf16.msra.mxu0 0
  %3346 = vmatprep.mubr.bf16.mxu0 0
  %3347 = vmatmul.mubr.bf16.gmra.mrb[0].mxu0 %v3242
  %v3348 = vpop.f32.mrb[0].mxu0
  %v3349 = vadd.f32 %v3264, %v3348
  %v3350 = vpop.f32.mrb[0].mxu0
  %v3351 = vpop.f32.mrb[0].mxu0
  %v3352 = vadd.f32 %v3264, %v3351
  %v3353 = vpop.f32.mrb[0].mxu0
  %3354 = vdwg.mxu0
  %v3355 = vsub.f32 0.0, %v3349
  %v3356 = vsub.f32 0.0, %v3352
  %v3357 = vmul.f32 %v3355, 1.442695
  %v3358 = vpow.pop %v3357
  %v3359 = vmul.f32 %v3356, 1.442695
  %v3360 = vpow.pop %v3359
  %v3361 = vadd.f32 %v3358, 1.0
  %v3362 = vadd.f32 %v3360, 1.0
  %v3363 = vrcp.pop %v3361
  %v3364 = vmul.f32 %v3349, %v3363
  %v3365 = vrcp.pop %v3362
  %v3366 = vmul.f32 %v3352, %v3365
  %v3367 = vsub.f32 0.0, %v3364
  %v3368 = vsub.f32 0.0, %v3366
  %v3369 = vmul.f32 %v3367, 1.442695
  %v3370 = vpow.pop %v3369
  %v3371 = vmul.f32 %v3368, 1.442695
  %v3372 = vpow.pop %v3371
  %v3373 = vadd.f32 %v3370, 1.0
  %v3374 = vadd.f32 %v3372, 1.0
  %v3375 = vrcp.pop %v3373
  %v3376 = vmul.f32 1.0, %v3375
  %v3377 = vrcp.pop %v3374
  %v3378 = vmul.f32 1.0, %v3377
  %3379 = vst [vmem:[%s16] sm:$0xff] %v3376
  %3380 = vst [vmem:[%s16 + $0x8] sm:$0xff] %v3378
  // Predicated region
  $region62: #{mcnet_forward.1} parent=0 // pred_check
    _
  $region63: #{mcnet_forward.1} parent=0 // pred_check_branch
    %3382 = sbr.rel (0) target = $region65
  $region64: #{mcnet_forward.1} parent=0 // pred_region
    _
  $region65: #{mcnet_forward.1} parent=0 // pred_fallthru
    _
  // Predicated region
  $region66: #{mcnet_forward.1} parent=0 // pred_check
    _
  $region67: #{mcnet_forward.1} parent=0 // pred_check_branch
    %3384 = sbr.rel (0) target = $region69
  $region68: #{mcnet_forward.1} parent=0 // pred_region
    _
  $region69: #{mcnet_forward.1} parent=0 // pred_fallthru
    _
  // Predicated region
  $region70: #{mcnet_forward.1} parent=0 // pred_check
    _
  $region71: #{mcnet_forward.1} parent=0 // pred_check_branch
    %3386 = sbr.rel (0) target = $region73
  $region72: #{mcnet_forward.1} parent=0 // pred_region
    _
  $region73: #{mcnet_forward.1} parent=0 // pred_fallthru
    _
  // Predicated region
  $region74: #{mcnet_forward.1} parent=0 // pred_check
    _
  $region75: #{mcnet_forward.1} parent=0 // pred_check_branch
    %3388 = sbr.rel (0) target = $region77
  $region76: #{mcnet_forward.1} parent=0 // pred_region
    _
  $region77: #{mcnet_forward.1} parent=0 // pred_fallthru
    _

</llo_original>
